<compile_context>
chip_gen: v7x
topology: tpu7x:2x2x1
jax: 0.10.0
libtpu: 0.0.40
codegen_flags: <defaults>
</compile_context>

<pallas_src>
import math
import functools

import jax
import jax.numpy as jnp
from jax.experimental import pallas as pl
from jax.experimental.pallas import tpu as pltpu


def mha_kernel(x_ref, wqkv_ref, bqkv_ref, wout_ref, bout_ref, o_ref,
               acc_ref, gout_ref, *, n_head, d_k, hg, tb, seq_len,
               compute_dtype):
    """One grid step = (one batch block) x (one group of hg heads).

    x_ref    : (tb, L, D)        activations (compute_dtype), resident across groups.
    wqkv_ref : (1, D, 3*hg*d_k)  this group's fused [Q_h..|K_..|V_..] weights
                                 (compute_dtype, Wq pre-scaled by 1/sqrt(d_k)).
    bqkv_ref : (G, 1, 3*hg*d_k)  all groups' fused biases, VMEM-resident (f32).
    wout_ref : (1, hg*d_k, D)    this group's rows of W_out (compute_dtype).
    bout_ref : (1, D)            output bias, VMEM-resident (f32).
    o_ref    : (tb, L, D)        output block, written on the last group.
    acc_ref  : (tb*L, D)   f32   VMEM accumulator over the group axis.
    gout_ref : (tb*L, hg*d_k)    bf16 staging for this group's head outputs.
    """
    g = pl.program_id(1)
    num_groups = pl.num_programs(1)
    D = n_head * d_k
    hd = hg * d_k
    M = tb * seq_len

    x = x_ref[...].reshape(M, D)                # already compute_dtype (wrapper cast)

    # Fused per-group QKV projection on the MXU (N = 3*hg*d_k), f32 accumulation.
    qkv = jnp.dot(x, wqkv_ref[0], preferred_element_type=jnp.float32)
    qkv = qkv + bqkv_ref[g]                     # (M, 3*hd); per-group bias row

    # hd-aligned lane slices (hd multiple of 128 for realistic d_k).
    q = qkv[:, 0 * hd:1 * hd].astype(compute_dtype)   # softmax scale folded into Wq/bq
    k = qkv[:, 1 * hd:2 * hd].astype(compute_dtype)
    v = qkv[:, 2 * hd:3 * hd].astype(compute_dtype)

    for j in range(hg):                         # static unroll over heads in group
        sl = slice(j * d_k, (j + 1) * d_k)
        qj = q[:, sl].reshape(tb, seq_len, d_k)
        kj = k[:, sl].reshape(tb, seq_len, d_k)
        vj = v[:, sl].reshape(tb, seq_len, d_k)

        # Contract on the last dim of both operands -> native transposed-RHS
        # matmul on the MXU (no XLU transpose of kj).
        s = jnp.einsum('bld,bmd->blm', qj, kj,
                       preferred_element_type=jnp.float32)      # (tb, L, L)

        # Softmax in f32; normalization via EUP reciprocal (not a VPU divide).
        # TODO(synk): optional mask would be applied to `s` here.
        s = s - jnp.max(s, axis=-1, keepdims=True)
        p = jnp.exp(s)
        denom = jnp.sum(p, axis=-1, keepdims=True)
        p = p * pl.reciprocal(denom, approx=True)

        ho = jnp.einsum('blm,bmd->bld', p.astype(compute_dtype), vj,
                        preferred_element_type=jnp.float32)     # (tb, L, d_k)
        gout_ref[:, sl] = ho.reshape(M, d_k).astype(compute_dtype)

    # Per-group output projection: contracts over K = hg*d_k (full MXU depth).
    partial = jnp.dot(gout_ref[...], wout_ref[0],
                      preferred_element_type=jnp.float32)       # (M, D)

    @pl.when(g == 0)
    def _init():
        acc_ref[...] = partial

    @pl.when(g > 0)
    def _accum():
        acc_ref[...] += partial

    @pl.when(g == num_groups - 1)
    def _finalize():
        out = acc_ref[...] + bout_ref[...]
        o_ref[...] = out.reshape(tb, seq_len, D).astype(o_ref.dtype)


def _is_multi_core_chip():
    """True on chips with 2 TensorCores (v7x); only there is it worth shrinking
    the batch block just to create a second parallel grid step."""
    try:
        kind = jax.devices()[0].device_kind.lower()
        return ("v7" in kind) or ("7x" in kind)
    except Exception:
        return False


def _vmem_limit_bytes():
    """~3/4 of the chip's physical VMEM (the default scoped limit is much lower)."""
    try:
        cap = pltpu.get_tpu_info().vmem_capacity_bytes
        return int(cap * 3 // 4)
    except Exception:
        return 48 * 1024 * 1024     # safe on v5e/v6e (128 MiB) and v7x (64 MiB)


def _pick_head_group(n_head, d_k, target_cols=256):
    """Smallest divisor hg of n_head with hg*d_k >= target_cols (MXU-friendly
    projection width, aligned q/k/v slices); fall back to all heads."""
    for hg in range(1, n_head + 1):
        if n_head % hg == 0 and hg * d_k >= target_cols:
            return hg
    return n_head


def _largest_divisor_leq(B, ub):
    ub = max(1, min(B, ub))
    while B % ub:
        ub -= 1
    return ub


def _vmem_estimate(tb, L, D, hd, out_itemsize, compute_itemsize=2):
    """Rough per-core VMEM footprint (double-buffered blocks + scratch + temps)."""
    M = tb * L
    x_blk = 2 * M * D * compute_itemsize
    o_blk = 2 * M * D * out_itemsize
    acc = M * D * 4
    gout = M * hd * compute_itemsize
    wqkv = 2 * D * 3 * hd * compute_itemsize
    wout = 2 * hd * D * compute_itemsize
    temps = M * 3 * hd * 4 + 3 * tb * L * L * 4    # qkv f32 + scores/softmax temps
    return x_blk + o_blk + acc + gout + wqkv + wout + temps


def _pick_block_batch(B, L, D, hd, out_itemsize, vmem_limit,
                      target_rows=512, multi_core=False):
    """Pack enough batch rows per step (tb*L) to amortize weight DMA and fill
    the MXU M dim; split for a 2nd parallel batch step only on 2-TC chips."""
    tb = _largest_divisor_leq(B, max(1, target_rows // max(L, 1)))
    if multi_core and B // tb < 2 and B >= 2:
        tb = _largest_divisor_leq(B, B // 2)
    while tb > 1 and _vmem_estimate(tb, L, D, hd, out_itemsize) > 0.7 * vmem_limit:
        tb = _largest_divisor_leq(B, tb - 1)
    return tb


def _prep_params(w_qkv, b_qkv, w_out, b_out, n_head, d_k, hg, compute_dtype):
    """Rearrange params into per-head-group blocks (once per call, outside the
    kernel). Weights cast to bf16 (halves weight DMA); 1/sqrt(d_k) folded into
    W_q / b_q. Group layout of columns: [Q_h0..Q_h{hg-1} | K_... | V_...]."""
    D = n_head * d_k
    G = n_head // hg
    hd = hg * d_k
    scale = 1.0 / math.sqrt(d_k)

    # w_qkv: (D, 3D), columns ordered [Q | K | V], each D wide, head-major inside.
    w = w_qkv.reshape(D, 3, G, hg, d_k)
    w = w.at[:, 0].multiply(scale)                       # fold scale into Wq
    w = jnp.transpose(w, (2, 0, 1, 3, 4)).reshape(G, D, 3 * hd)

    b = b_qkv.reshape(3, G, hg, d_k)
    b = b.at[0].multiply(scale)                          # fold scale into bq
    b = jnp.transpose(b, (1, 0, 2, 3)).reshape(G, 1, 3 * hd)

    w_o = w_out.reshape(G, hd, D)                        # rows grouped per head-group

    return (w.astype(compute_dtype), b.astype(jnp.float32),
            w_o.astype(compute_dtype), b_out.astype(jnp.float32))


def multi_head_attention(x, w_qkv, b_qkv, w_out, b_out, *, n_head,
                         compute_dtype=jnp.bfloat16,
                         block_batch=None, head_group=None):
    """x: (B, L, D); w_qkv: (D, 3D); b_qkv: (1, 3D); w_out: (D, D); b_out: (1, D).
    Weights stored as [in_features, out_features] so the kernel computes x @ W + b
    (same math as the PyTorch module)."""
    B, L, D = x.shape
    assert D % n_head == 0
    d_k = D // n_head

    hg = head_group if head_group is not None else _pick_head_group(n_head, d_k)
    assert n_head % hg == 0
    G = n_head // hg
    hd = hg * d_k

    vmem_limit = _vmem_limit_bytes()
    tb = block_batch if block_batch is not None else _pick_block_batch(
        B, L, D, hd, x.dtype.itemsize, vmem_limit,
        multi_core=_is_multi_core_chip())
    assert B % tb == 0

    wqkv_g, bqkv_g, wout_g, bout = _prep_params(
        w_qkv, b_qkv, w_out, b_out, n_head, d_k, hg, compute_dtype)

    kernel = functools.partial(mha_kernel, n_head=n_head, d_k=d_k, hg=hg,
                               tb=tb, seq_len=L, compute_dtype=compute_dtype)

    return pl.pallas_call(
        kernel,
        out_shape=jax.ShapeDtypeStruct((B, L, D), x.dtype),
        grid_spec=pltpu.PrefetchScalarGridSpec(
            num_scalar_prefetch=0,
            grid=(B // tb, G),                       # head-group (reduction) axis last
            in_specs=[
                pl.BlockSpec((tb, L, D), lambda bb, g: (bb, 0, 0)),     # x (bf16)
                pl.BlockSpec((1, D, 3 * hd), lambda bb, g: (g, 0, 0)),  # Wqkv[group]
                pl.BlockSpec((G, 1, 3 * hd), lambda bb, g: (0, 0, 0)),  # bqkv (resident)
                pl.BlockSpec((1, hd, D), lambda bb, g: (g, 0, 0)),      # Wout[group]
                pl.BlockSpec((1, D), lambda bb, g: (0, 0)),             # bout (resident)
            ],
            out_specs=pl.BlockSpec((tb, L, D), lambda bb, g: (bb, 0, 0)),
            scratch_shapes=[pltpu.VMEM((tb * L, D), jnp.float32),
                            pltpu.VMEM((tb * L, hd), compute_dtype)],
        ),
        compiler_params=pltpu.CompilerParams(
            dimension_semantics=("parallel", "arbitrary"),
            vmem_limit_bytes=vmem_limit),
    )(x.astype(compute_dtype), wqkv_g, bqkv_g, wout_g, bout)


def reference_mha(x, w_qkv, b_qkv, w_out, b_out, *, n_head):
    """Pure-JAX f32 reference mirroring the PyTorch forward (mask=None)."""
    B, L, D = x.shape
    d_k = D // n_head
    qkv = x @ w_qkv + b_qkv[0]
    q, k, v = jnp.split(qkv, 3, axis=-1)

    def heads(t):
        return t.reshape(B, L, n_head, d_k).transpose(0, 2, 1, 3)

    q, k, v = heads(q), heads(k), heads(v)
    scores = (q @ jnp.swapaxes(k, -2, -1)) / math.sqrt(d_k)
    attn = jax.nn.softmax(scores, axis=-1)
    out = (attn @ v).transpose(0, 2, 1, 3).reshape(B, L, D)
    return out @ w_out + b_out[0]


if __name__ == "__main__":
    def run_case(key, B, L, d_model, n_head, atol):
        kx, k1, k2, k3, k4 = jax.random.split(key, 5)
        x = jax.random.normal(kx, (B, L, d_model), dtype=jnp.float32)
        s = 1.0 / math.sqrt(d_model)
        w_qkv = jax.random.uniform(k1, (d_model, 3 * d_model), jnp.float32, -s, s)
        b_qkv = jax.random.uniform(k2, (1, 3 * d_model), jnp.float32, -s, s)
        w_out = jax.random.uniform(k3, (d_model, d_model), jnp.float32, -s, s)
        b_out = jax.random.uniform(k4, (1, d_model), jnp.float32, -s, s)

        y = multi_head_attention(x, w_qkv, b_qkv, w_out, b_out, n_head=n_head)
        y = jax.block_until_ready(y)
        y_ref = reference_mha(x, w_qkv, b_qkv, w_out, b_out, n_head=n_head)
        err = jnp.max(jnp.abs(y - y_ref))
        # bf16 MXU operands with f32 accumulation -> bf16-level tolerance.
        assert jnp.allclose(y, y_ref, atol=atol, rtol=atol), f"max abs err = {err}"

    root = jax.random.PRNGKey(0)
    k_small, k_big = jax.random.split(root)

    # Small smoke test (sub-tile shapes, fully padded lanes/sublanes).
    run_case(k_small, B=2, L=8, d_model=32, n_head=4, atol=5e-2)
    # Tile-aligned shapes: d_k=64 -> hg=4, two head groups; exercises the grouped
    # weight layout, aligned lane slices and the group-axis accumulation path.
    run_case(k_big, B=2, L=128, d_model=512, n_head=8, atol=7e-2)

    print("KERNEL_OK")
</pallas_src>

<mosaic_0001>
module attributes {stable_mosaic.version = 11 : i64} {
  func.func @mha_kernel(%arg0: i32, %arg1: i32, %arg2: memref<2x8x32xbf16, #tpu.memory_space<vmem>>, %arg3: memref<1x32x96xbf16, #tpu.memory_space<vmem>>, %arg4: memref<1x1x96xf32, #tpu.memory_space<vmem>>, %arg5: memref<1x32x32xbf16, #tpu.memory_space<vmem>>, %arg6: memref<1x32xf32, #tpu.memory_space<vmem>>, %arg7: memref<2x8x32xf32, #tpu.memory_space<vmem>>, %arg8: memref<16x32xf32, #tpu.memory_space<vmem>>, %arg9: memref<16x32xbf16, #tpu.memory_space<vmem>>) attributes {dimension_semantics = [#tpu.dimension_semantics<parallel>, #tpu.dimension_semantics<arbitrary>], iteration_bounds = array<i64: 1, 1>, scalar_prefetch = 0 : i64, scratch_operands = 2 : i64, tpu.core_type = #tpu.core_type<tc>, window_params = [{transform_indices = @transform_0, window_bounds = array<i64: 2, 8, 32>}, {transform_indices = @transform_1, window_bounds = array<i64: 1, 32, 96>}, {pipeline_mode = #tpu.pipeline_mode<synchronous>, transform_indices = @transform_2, window_bounds = array<i64: 1, 1, 96>}, {transform_indices = @transform_3, window_bounds = array<i64: 1, 32, 32>}, {pipeline_mode = #tpu.pipeline_mode<synchronous>, transform_indices = @transform_4, window_bounds = array<i64: 1, 32>}, {transform_indices = @transform_5, window_bounds = array<i64: 2, 8, 32>}]} {
    %c0 = arith.constant 0 : index
    %c0_0 = arith.constant 0 : index
    %c0_1 = arith.constant 0 : index
    %0 = vector.load %arg2[%c0, %c0_0, %c0_1] : memref<2x8x32xbf16, #tpu.memory_space<vmem>>, vector<2x8x32xbf16>
    %1 = vector.shape_cast %0 : vector<2x8x32xbf16> to vector<16x32xbf16>
    %c0_2 = arith.constant 0 : index
    %c0_3 = arith.constant 0 : index
    %c0_4 = arith.constant 0 : index
    %2 = vector.load %arg3[%c0_2, %c0_3, %c0_4] : memref<1x32x96xbf16, #tpu.memory_space<vmem>>, vector<1x32x96xbf16>
    %3 = vector.shape_cast %2 : vector<1x32x96xbf16> to vector<32x96xbf16>
    %cst = arith.constant dense<0.000000e+00> : vector<16x96xf32>
    %4 = tpu.matmul %1, %3, %cst {dimension_numbers = #tpu.dot_dimension_numbers<[1], [0], [0], [1], [0, 0, 1, 1], [], []>} : vector<16x32xbf16>, vector<32x96xbf16>, vector<16x96xf32> -> vector<16x96xf32>
    %5 = arith.index_cast %arg1 : i32 to index
    %c0_5 = arith.constant 0 : index
    %c0_6 = arith.constant 0 : index
    %6 = vector.load %arg4[%5, %c0_5, %c0_6] : memref<1x1x96xf32, #tpu.memory_space<vmem>>, vector<1x1x96xf32>
    %7 = vector.shape_cast %6 : vector<1x1x96xf32> to vector<1x96xf32>
    %8 = vector.broadcast %7 : vector<1x96xf32> to vector<16x96xf32>
    %9 = arith.addf %4, %8 : vector<16x96xf32>
    %10 = vector.extract_strided_slice %9 {offsets = [0, 0], sizes = [16, 32], strides = [1, 1]} : vector<16x96xf32> to vector<16x32xf32>
    %11 = arith.truncf %10 : vector<16x32xf32> to vector<16x32xbf16>
    %12 = vector.extract_strided_slice %9 {offsets = [0, 32], sizes = [16, 32], strides = [1, 1]} : vector<16x96xf32> to vector<16x32xf32>
    %13 = arith.truncf %12 : vector<16x32xf32> to vector<16x32xbf16>
    %14 = vector.extract_strided_slice %9 {offsets = [0, 64], sizes = [16, 32], strides = [1, 1]} : vector<16x96xf32> to vector<16x32xf32>
    %15 = arith.truncf %14 : vector<16x32xf32> to vector<16x32xbf16>
    %16 = vector.extract_strided_slice %11 {offsets = [0, 0], sizes = [16, 8], strides = [1, 1]} : vector<16x32xbf16> to vector<16x8xbf16>
    %17 = vector.shape_cast %16 : vector<16x8xbf16> to vector<2x8x8xbf16>
    %18 = vector.extract_strided_slice %13 {offsets = [0, 0], sizes = [16, 8], strides = [1, 1]} : vector<16x32xbf16> to vector<16x8xbf16>
    %19 = vector.shape_cast %18 : vector<16x8xbf16> to vector<2x8x8xbf16>
    %20 = vector.extract_strided_slice %15 {offsets = [0, 0], sizes = [16, 8], strides = [1, 1]} : vector<16x32xbf16> to vector<16x8xbf16>
    %21 = vector.shape_cast %20 : vector<16x8xbf16> to vector<2x8x8xbf16>
    "tpu.trace_start"() <{level = 10 : i32, message = "bld,bmd->blm"}> : () -> ()
    %cst_7 = arith.constant dense<0.000000e+00> : vector<2x8x8xf32>
    %22 = tpu.matmul %17, %19, %cst_7 {dimension_numbers = #tpu.dot_dimension_numbers<[2], [2], [1], [1], [0, 0, 0, 1, 1, 1], [0], [0]>} : vector<2x8x8xbf16>, vector<2x8x8xbf16>, vector<2x8x8xf32> -> vector<2x8x8xf32>
    "tpu.trace_stop"() : () -> ()
    %cst_8 = arith.constant dense<0xFF800000> : vector<2x8xf32>
    %23 = vector.multi_reduction <maximumf>, %22, %cst_8 [2] : vector<2x8x8xf32> to vector<2x8xf32>
    %24 = vector.shape_cast %23 : vector<2x8xf32> to vector<2x8x1xf32>
    %25 = vector.broadcast %24 : vector<2x8x1xf32> to vector<2x8x8xf32>
    %26 = arith.subf %22, %25 : vector<2x8x8xf32>
    %27 = math.exp %26 : vector<2x8x8xf32>
    %cst_9 = arith.constant dense<0.000000e+00> : vector<2x8xf32>
    %28 = vector.multi_reduction <add>, %27, %cst_9 [2] : vector<2x8x8xf32> to vector<2x8xf32>
    %29 = vector.shape_cast %28 : vector<2x8xf32> to vector<2x8x1xf32>
    %30 = tpu.reciprocal %29 {approx = true} : vector<2x8x1xf32> -> vector<2x8x1xf32>
    %31 = vector.broadcast %30 : vector<2x8x1xf32> to vector<2x8x8xf32>
    %32 = arith.mulf %27, %31 : vector<2x8x8xf32>
    %33 = arith.truncf %32 : vector<2x8x8xf32> to vector<2x8x8xbf16>
    "tpu.trace_start"() <{level = 10 : i32, message = "blm,bmd->bld"}> : () -> ()
    %cst_10 = arith.constant dense<0.000000e+00> : vector<2x8x8xf32>
    %34 = tpu.matmul %33, %21, %cst_10 {dimension_numbers = #tpu.dot_dimension_numbers<[2], [1], [1], [2], [0, 0, 0, 1, 1, 2], [0], [0]>} : vector<2x8x8xbf16>, vector<2x8x8xbf16>, vector<2x8x8xf32> -> vector<2x8x8xf32>
    "tpu.trace_stop"() : () -> ()
    %35 = vector.shape_cast %34 : vector<2x8x8xf32> to vector<16x8xf32>
    %36 = arith.truncf %35 : vector<16x8xf32> to vector<16x8xbf16>
    %c0_11 = arith.constant 0 : index
    %c0_12 = arith.constant 0 : index
    %37 = vector.load %arg9[%c0_11, %c0_12] : memref<16x32xbf16, #tpu.memory_space<vmem>>, vector<16x8xbf16>
    tpu.vector_store %arg9[%c0_11, %c0_12], %36 {strides = array<i32>} : memref<16x32xbf16, #tpu.memory_space<vmem>>, vector<16x8xbf16>,
    %38 = vector.extract_strided_slice %11 {offsets = [0, 8], sizes = [16, 8], strides = [1, 1]} : vector<16x32xbf16> to vector<16x8xbf16>
    %39 = vector.shape_cast %38 : vector<16x8xbf16> to vector<2x8x8xbf16>
    %40 = vector.extract_strided_slice %13 {offsets = [0, 8], sizes = [16, 8], strides = [1, 1]} : vector<16x32xbf16> to vector<16x8xbf16>
    %41 = vector.shape_cast %40 : vector<16x8xbf16> to vector<2x8x8xbf16>
    %42 = vector.extract_strided_slice %15 {offsets = [0, 8], sizes = [16, 8], strides = [1, 1]} : vector<16x32xbf16> to vector<16x8xbf16>
    %43 = vector.shape_cast %42 : vector<16x8xbf16> to vector<2x8x8xbf16>
    "tpu.trace_start"() <{level = 10 : i32, message = "bld,bmd->blm"}> : () -> ()
    %cst_13 = arith.constant dense<0.000000e+00> : vector<2x8x8xf32>
    %44 = tpu.matmul %39, %41, %cst_13 {dimension_numbers = #tpu.dot_dimension_numbers<[2], [2], [1], [1], [0, 0, 0, 1, 1, 1], [0], [0]>} : vector<2x8x8xbf16>, vector<2x8x8xbf16>, vector<2x8x8xf32> -> vector<2x8x8xf32>
    "tpu.trace_stop"() : () -> ()
    %cst_14 = arith.constant dense<0xFF800000> : vector<2x8xf32>
    %45 = vector.multi_reduction <maximumf>, %44, %cst_14 [2] : vector<2x8x8xf32> to vector<2x8xf32>
    %46 = vector.shape_cast %45 : vector<2x8xf32> to vector<2x8x1xf32>
    %47 = vector.broadcast %46 : vector<2x8x1xf32> to vector<2x8x8xf32>
    %48 = arith.subf %44, %47 : vector<2x8x8xf32>
    %49 = math.exp %48 : vector<2x8x8xf32>
    %cst_15 = arith.constant dense<0.000000e+00> : vector<2x8xf32>
    %50 = vector.multi_reduction <add>, %49, %cst_15 [2] : vector<2x8x8xf32> to vector<2x8xf32>
    %51 = vector.shape_cast %50 : vector<2x8xf32> to vector<2x8x1xf32>
    %52 = tpu.reciprocal %51 {approx = true} : vector<2x8x1xf32> -> vector<2x8x1xf32>
    %53 = vector.broadcast %52 : vector<2x8x1xf32> to vector<2x8x8xf32>
    %54 = arith.mulf %49, %53 : vector<2x8x8xf32>
    %55 = arith.truncf %54 : vector<2x8x8xf32> to vector<2x8x8xbf16>
    "tpu.trace_start"() <{level = 10 : i32, message = "blm,bmd->bld"}> : () -> ()
    %cst_16 = arith.constant dense<0.000000e+00> : vector<2x8x8xf32>
    %56 = tpu.matmul %55, %43, %cst_16 {dimension_numbers = #tpu.dot_dimension_numbers<[2], [1], [1], [2], [0, 0, 0, 1, 1, 2], [0], [0]>} : vector<2x8x8xbf16>, vector<2x8x8xbf16>, vector<2x8x8xf32> -> vector<2x8x8xf32>
    "tpu.trace_stop"() : () -> ()
    %57 = vector.shape_cast %56 : vector<2x8x8xf32> to vector<16x8xf32>
    %58 = arith.truncf %57 : vector<16x8xf32> to vector<16x8xbf16>
    %c0_17 = arith.constant 0 : index
    %c8 = arith.constant 8 : index
    %59 = vector.load %arg9[%c0_17, %c8] : memref<16x32xbf16, #tpu.memory_space<vmem>>, vector<16x8xbf16>
    tpu.vector_store %arg9[%c0_17, %c8], %58 {strides = array<i32>} : memref<16x32xbf16, #tpu.memory_space<vmem>>, vector<16x8xbf16>,
    %60 = vector.extract_strided_slice %11 {offsets = [0, 16], sizes = [16, 8], strides = [1, 1]} : vector<16x32xbf16> to vector<16x8xbf16>
    %61 = vector.shape_cast %60 : vector<16x8xbf16> to vector<2x8x8xbf16>
    %62 = vector.extract_strided_slice %13 {offsets = [0, 16], sizes = [16, 8], strides = [1, 1]} : vector<16x32xbf16> to vector<16x8xbf16>
    %63 = vector.shape_cast %62 : vector<16x8xbf16> to vector<2x8x8xbf16>
    %64 = vector.extract_strided_slice %15 {offsets = [0, 16], sizes = [16, 8], strides = [1, 1]} : vector<16x32xbf16> to vector<16x8xbf16>
    %65 = vector.shape_cast %64 : vector<16x8xbf16> to vector<2x8x8xbf16>
    "tpu.trace_start"() <{level = 10 : i32, message = "bld,bmd->blm"}> : () -> ()
    %cst_18 = arith.constant dense<0.000000e+00> : vector<2x8x8xf32>
    %66 = tpu.matmul %61, %63, %cst_18 {dimension_numbers = #tpu.dot_dimension_numbers<[2], [2], [1], [1], [0, 0, 0, 1, 1, 1], [0], [0]>} : vector<2x8x8xbf16>, vector<2x8x8xbf16>, vector<2x8x8xf32> -> vector<2x8x8xf32>
    "tpu.trace_stop"() : () -> ()
    %cst_19 = arith.constant dense<0xFF800000> : vector<2x8xf32>
    %67 = vector.multi_reduction <maximumf>, %66, %cst_19 [2] : vector<2x8x8xf32> to vector<2x8xf32>
    %68 = vector.shape_cast %67 : vector<2x8xf32> to vector<2x8x1xf32>
    %69 = vector.broadcast %68 : vector<2x8x1xf32> to vector<2x8x8xf32>
    %70 = arith.subf %66, %69 : vector<2x8x8xf32>
    %71 = math.exp %70 : vector<2x8x8xf32>
    %cst_20 = arith.constant dense<0.000000e+00> : vector<2x8xf32>
    %72 = vector.multi_reduction <add>, %71, %cst_20 [2] : vector<2x8x8xf32> to vector<2x8xf32>
    %73 = vector.shape_cast %72 : vector<2x8xf32> to vector<2x8x1xf32>
    %74 = tpu.reciprocal %73 {approx = true} : vector<2x8x1xf32> -> vector<2x8x1xf32>
    %75 = vector.broadcast %74 : vector<2x8x1xf32> to vector<2x8x8xf32>
    %76 = arith.mulf %71, %75 : vector<2x8x8xf32>
    %77 = arith.truncf %76 : vector<2x8x8xf32> to vector<2x8x8xbf16>
    "tpu.trace_start"() <{level = 10 : i32, message = "blm,bmd->bld"}> : () -> ()
    %cst_21 = arith.constant dense<0.000000e+00> : vector<2x8x8xf32>
    %78 = tpu.matmul %77, %65, %cst_21 {dimension_numbers = #tpu.dot_dimension_numbers<[2], [1], [1], [2], [0, 0, 0, 1, 1, 2], [0], [0]>} : vector<2x8x8xbf16>, vector<2x8x8xbf16>, vector<2x8x8xf32> -> vector<2x8x8xf32>
    "tpu.trace_stop"() : () -> ()
    %79 = vector.shape_cast %78 : vector<2x8x8xf32> to vector<16x8xf32>
    %80 = arith.truncf %79 : vector<16x8xf32> to vector<16x8xbf16>
    %c0_22 = arith.constant 0 : index
    %c16 = arith.constant 16 : index
    %81 = vector.load %arg9[%c0_22, %c16] : memref<16x32xbf16, #tpu.memory_space<vmem>>, vector<16x8xbf16>
    tpu.vector_store %arg9[%c0_22, %c16], %80 {strides = array<i32>} : memref<16x32xbf16, #tpu.memory_space<vmem>>, vector<16x8xbf16>,
    %82 = vector.extract_strided_slice %11 {offsets = [0, 24], sizes = [16, 8], strides = [1, 1]} : vector<16x32xbf16> to vector<16x8xbf16>
    %83 = vector.shape_cast %82 : vector<16x8xbf16> to vector<2x8x8xbf16>
    %84 = vector.extract_strided_slice %13 {offsets = [0, 24], sizes = [16, 8], strides = [1, 1]} : vector<16x32xbf16> to vector<16x8xbf16>
    %85 = vector.shape_cast %84 : vector<16x8xbf16> to vector<2x8x8xbf16>
    %86 = vector.extract_strided_slice %15 {offsets = [0, 24], sizes = [16, 8], strides = [1, 1]} : vector<16x32xbf16> to vector<16x8xbf16>
    %87 = vector.shape_cast %86 : vector<16x8xbf16> to vector<2x8x8xbf16>
    "tpu.trace_start"() <{level = 10 : i32, message = "bld,bmd->blm"}> : () -> ()
    %cst_23 = arith.constant dense<0.000000e+00> : vector<2x8x8xf32>
    %88 = tpu.matmul %83, %85, %cst_23 {dimension_numbers = #tpu.dot_dimension_numbers<[2], [2], [1], [1], [0, 0, 0, 1, 1, 1], [0], [0]>} : vector<2x8x8xbf16>, vector<2x8x8xbf16>, vector<2x8x8xf32> -> vector<2x8x8xf32>
    "tpu.trace_stop"() : () -> ()
    %cst_24 = arith.constant dense<0xFF800000> : vector<2x8xf32>
    %89 = vector.multi_reduction <maximumf>, %88, %cst_24 [2] : vector<2x8x8xf32> to vector<2x8xf32>
    %90 = vector.shape_cast %89 : vector<2x8xf32> to vector<2x8x1xf32>
    %91 = vector.broadcast %90 : vector<2x8x1xf32> to vector<2x8x8xf32>
    %92 = arith.subf %88, %91 : vector<2x8x8xf32>
    %93 = math.exp %92 : vector<2x8x8xf32>
    %cst_25 = arith.constant dense<0.000000e+00> : vector<2x8xf32>
    %94 = vector.multi_reduction <add>, %93, %cst_25 [2] : vector<2x8x8xf32> to vector<2x8xf32>
    %95 = vector.shape_cast %94 : vector<2x8xf32> to vector<2x8x1xf32>
    %96 = tpu.reciprocal %95 {approx = true} : vector<2x8x1xf32> -> vector<2x8x1xf32>
    %97 = vector.broadcast %96 : vector<2x8x1xf32> to vector<2x8x8xf32>
    %98 = arith.mulf %93, %97 : vector<2x8x8xf32>
    %99 = arith.truncf %98 : vector<2x8x8xf32> to vector<2x8x8xbf16>
    "tpu.trace_start"() <{level = 10 : i32, message = "blm,bmd->bld"}> : () -> ()
    %cst_26 = arith.constant dense<0.000000e+00> : vector<2x8x8xf32>
    %100 = tpu.matmul %99, %87, %cst_26 {dimension_numbers = #tpu.dot_dimension_numbers<[2], [1], [1], [2], [0, 0, 0, 1, 1, 2], [0], [0]>} : vector<2x8x8xbf16>, vector<2x8x8xbf16>, vector<2x8x8xf32> -> vector<2x8x8xf32>
    "tpu.trace_stop"() : () -> ()
    %101 = vector.shape_cast %100 : vector<2x8x8xf32> to vector<16x8xf32>
    %102 = arith.truncf %101 : vector<16x8xf32> to vector<16x8xbf16>
    %c0_27 = arith.constant 0 : index
    %c24 = arith.constant 24 : index
    %103 = vector.load %arg9[%c0_27, %c24] : memref<16x32xbf16, #tpu.memory_space<vmem>>, vector<16x8xbf16>
    tpu.vector_store %arg9[%c0_27, %c24], %102 {strides = array<i32>} : memref<16x32xbf16, #tpu.memory_space<vmem>>, vector<16x8xbf16>,
    %c0_28 = arith.constant 0 : index
    %c0_29 = arith.constant 0 : index
    %104 = vector.load %arg9[%c0_28, %c0_29] : memref<16x32xbf16, #tpu.memory_space<vmem>>, vector<16x32xbf16>
    %c0_30 = arith.constant 0 : index
    %c0_31 = arith.constant 0 : index
    %c0_32 = arith.constant 0 : index
    %105 = vector.load %arg5[%c0_30, %c0_31, %c0_32] : memref<1x32x32xbf16, #tpu.memory_space<vmem>>, vector<1x32x32xbf16>
    %106 = vector.shape_cast %105 : vector<1x32x32xbf16> to vector<32x32xbf16>
    %cst_33 = arith.constant dense<0.000000e+00> : vector<16x32xf32>
    %107 = tpu.matmul %104, %106, %cst_33 {dimension_numbers = #tpu.dot_dimension_numbers<[1], [0], [0], [1], [0, 0, 1, 1], [], []>} : vector<16x32xbf16>, vector<32x32xbf16>, vector<16x32xf32> -> vector<16x32xf32>
    %c0_i32 = arith.constant 0 : i32
    %108 = arith.cmpi eq, %arg1, %c0_i32 : i32
    %109 = arith.extui %108 : i1 to i32
    %c0_i32_34 = arith.constant 0 : i32
    %110 = arith.cmpi ne, %109, %c0_i32_34 : i32
    scf.if %110 {
      %c0_39 = arith.constant 0 : index
      %c0_40 = arith.constant 0 : index
      %117 = vector.load %arg8[%c0_39, %c0_40] : memref<16x32xf32, #tpu.memory_space<vmem>>, vector<16x32xf32>
      tpu.vector_store %arg8[%c0_39, %c0_40], %107 {strides = array<i32>} : memref<16x32xf32, #tpu.memory_space<vmem>>, vector<16x32xf32>,
    } else {
    }
    %c0_i32_35 = arith.constant 0 : i32
    %111 = arith.cmpi sgt, %arg1, %c0_i32_35 : i32
    %112 = arith.extui %111 : i1 to i32
    %c0_i32_36 = arith.constant 0 : i32
    %113 = arith.cmpi ne, %112, %c0_i32_36 : i32
    scf.if %113 {
      %c0_39 = arith.constant 0 : index
      %c0_40 = arith.constant 0 : index
      %117 = vector.load %arg8[%c0_39, %c0_40] : memref<16x32xf32, #tpu.memory_space<vmem>>, vector<16x32xf32>
      %118 = arith.addf %117, %107 : vector<16x32xf32>
      %c0_41 = arith.constant 0 : index
      %c0_42 = arith.constant 0 : index
      %119 = vector.load %arg8[%c0_41, %c0_42] : memref<16x32xf32, #tpu.memory_space<vmem>>, vector<16x32xf32>
      tpu.vector_store %arg8[%c0_41, %c0_42], %118 {strides = array<i32>} : memref<16x32xf32, #tpu.memory_space<vmem>>, vector<16x32xf32>,
    } else {
    }
    %c0_i32_37 = arith.constant 0 : i32
    %114 = arith.cmpi eq, %arg1, %c0_i32_37 : i32
    %115 = arith.extui %114 : i1 to i32
    %c0_i32_38 = arith.constant 0 : i32
    %116 = arith.cmpi ne, %115, %c0_i32_38 : i32
    scf.if %116 {
      %c0_39 = arith.constant 0 : index
      %c0_40 = arith.constant 0 : index
      %117 = vector.load %arg8[%c0_39, %c0_40] : memref<16x32xf32, #tpu.memory_space<vmem>>, vector<16x32xf32>
      %c0_41 = arith.constant 0 : index
      %c0_42 = arith.constant 0 : index
      %118 = vector.load %arg6[%c0_41, %c0_42] : memref<1x32xf32, #tpu.memory_space<vmem>>, vector<1x32xf32>
      %119 = vector.broadcast %118 : vector<1x32xf32> to vector<16x32xf32>
      %120 = arith.addf %117, %119 : vector<16x32xf32>
      %121 = vector.shape_cast %120 : vector<16x32xf32> to vector<2x8x32xf32>
      %c0_43 = arith.constant 0 : index
      %c0_44 = arith.constant 0 : index
      %c0_45 = arith.constant 0 : index
      %122 = vector.load %arg7[%c0_43, %c0_44, %c0_45] : memref<2x8x32xf32, #tpu.memory_space<vmem>>, vector<2x8x32xf32>
      tpu.vector_store %arg7[%c0_43, %c0_44, %c0_45], %121 {strides = array<i32>} : memref<2x8x32xf32, #tpu.memory_space<vmem>>, vector<2x8x32xf32>,
    } else {
    }
    return
  }
  func.func @transform_0(%arg0: i32, %arg1: i32) -> (i32, i32, i32) {
    %c0_i32 = arith.constant 0 : i32
    %c0_i32_0 = arith.constant 0 : i32
    %c0_i32_1 = arith.constant 0 : i32
    return %arg0, %c0_i32, %c0_i32_0 : i32, i32, i32
  }
  func.func @transform_1(%arg0: i32, %arg1: i32) -> (i32, i32, i32) {
    %c0_i32 = arith.constant 0 : i32
    %c0_i32_0 = arith.constant 0 : i32
    %c0_i32_1 = arith.constant 0 : i32
    return %arg1, %c0_i32, %c0_i32_0 : i32, i32, i32
  }
  func.func @transform_2(%arg0: i32, %arg1: i32) -> (i32, i32, i32) {
    %c0_i32 = arith.constant 0 : i32
    %c0_i32_0 = arith.constant 0 : i32
    %c0_i32_1 = arith.constant 0 : i32
    %c0_i32_2 = arith.constant 0 : i32
    return %c0_i32, %c0_i32_0, %c0_i32_1 : i32, i32, i32
  }
  func.func @transform_3(%arg0: i32, %arg1: i32) -> (i32, i32, i32) {
    %c0_i32 = arith.constant 0 : i32
    %c0_i32_0 = arith.constant 0 : i32
    %c0_i32_1 = arith.constant 0 : i32
    return %arg1, %c0_i32, %c0_i32_0 : i32, i32, i32
  }
  func.func @transform_4(%arg0: i32, %arg1: i32) -> (i32, i32) {
    %c0_i32 = arith.constant 0 : i32
    %c0_i32_0 = arith.constant 0 : i32
    %c0_i32_1 = arith.constant 0 : i32
    return %c0_i32, %c0_i32_0 : i32, i32
  }
  func.func @transform_5(%arg0: i32, %arg1: i32) -> (i32, i32, i32) {
    %c0_i32 = arith.constant 0 : i32
    %c0_i32_0 = arith.constant 0 : i32
    %c0_i32_1 = arith.constant 0 : i32
    return %arg0, %c0_i32, %c0_i32_0 : i32, i32, i32
  }
}

</mosaic_0001>

<llo_original>
// kernel: tpu_custom_call.1
$region0: #{tpu_custom_call.1}
  #allocation0 [shape = 'u32[]', space=smem, size = 0x4, offset = 0x4, fixed_abs, tag = 'smem constant byte address 0x4 - core index']
  #allocation1 [shape = 'u32[144,128]{1,0:T(1,128)}', space=vmem, size = 0x12000, scoped, tag = 'internal scratch']
  #allocation2 [shape = 'f32[16,32]{1,0:T(8,128)}', space=vmem, size = 0x2000, scoped, tag = 'scratch operand']
  #allocation3 [shape = 'bf16[16,32]{1,0:T(16,128)(2,1)}', space=vmem, size = 0x1000, scoped, tag = 'scratch operand']
  %s0 = inlined_call_operand.hbm [shape: bf16[2,8,32], index: 0, kind: input, shape index: {}]
  %s1 = inlined_call_operand.hbm [shape: bf16[1,32,96], index: 1, kind: input, shape index: {}]
  %s2 = inlined_call_operand.vmem [shape: f32[1,1,96], index: 2, kind: input, shape index: {}]
  %s3 = inlined_call_operand.hbm [shape: bf16[1,32,32], index: 3, kind: input, shape index: {}]
  %s4 = inlined_call_operand.vmem [shape: f32[1,32], index: 4, kind: input, shape index: {}]
  %s5 = inlined_call_operand.hbm [shape: f32[2,8,32], index: 5, kind: output, shape index: {}]
  %s6 = sld [smem:[#allocation0]]
  $region54: #{tpu_custom_call.1} parent=0
    _
  %s8 = ssub.s32 1, %s6
  %s9 = scalar_select 0, %s8, %s6
  $region1: #{tpu_custom_call.1} parent=0
    #allocation4 [shape = 'u8[4096]{0}', space=vmem, size = 0x1000, scoped, tag = 'input window, operand 0, single buffered']
    #allocation5 [shape = 's32[1]{0}', space=sflag, size = 0x4, scoped, tag = 'scoped memory for tpu_custom_call.1']
    #allocation6 [shape = 's32[1]{0}', space=sflag, size = 0x4, scoped, tag = 'scoped memory for tpu_custom_call.1']
    #allocation7 [shape = 'u8[8192]{0}', space=vmem, size = 0x2000, scoped, tag = 'input window, operand 1, single buffered']
    #allocation8 [shape = 's32[1]{0}', space=sflag, size = 0x4, scoped, tag = 'scoped memory for tpu_custom_call.1']
    #allocation9 [shape = 'u8[8192]{0}', space=vmem, size = 0x2000, scoped, tag = 'input window, operand 3, single buffered']
    #allocation10 [shape = 'u8[8192]{0}', space=vmem, size = 0x2000, scoped, tag = 'output window, operand 0, single buffered']
    %10 = vsyncpa [#allocation5], 0
    %11 = vsyncpa [#allocation8], 0
    %12 = vsyncpa [#allocation6], 0
    // Predicated region
    $region2: #{tpu_custom_call.1} parent=1 // pred_check
      _
    $region3: #{tpu_custom_call.1} parent=1 // pred_check_branch
      %14 = sbr.rel (0) target = $region5
    $region4: #{tpu_custom_call.1} parent=1 // pred_region
      %s16 = ssub.s32 128, 128
      %17 = vsyncadd [#allocation5], %s16
      %s18 = sshll.u32 [#allocation4], 4
      %s19 = int_to_ptr.vmem [resolvable:$true] %s18
      %24 = dma.hbm_to_vmem [thread:$0]  %s0, 128, %s19, [#allocation5], 64, 64, 4
    $region5: #{tpu_custom_call.1} parent=1 // pred_fallthru
      _
    // Predicated region
    $region6: #{tpu_custom_call.1} parent=1 // pred_check
      _
    $region7: #{tpu_custom_call.1} parent=1 // pred_check_branch
      %26 = sbr.rel (0) target = $region9
    $region8: #{tpu_custom_call.1} parent=1 // pred_region
      %s28 = ssub.s32 256, 256
      %29 = vsyncadd [#allocation8], %s28
      %s30 = sshll.u32 [#allocation7], 4
      %s31 = int_to_ptr.vmem [resolvable:$true] %s30
      %36 = dma.hbm_to_vmem [thread:$0]  %s1, 256, %s31, [#allocation8], 64, 64, 4
    $region9: #{tpu_custom_call.1} parent=1 // pred_fallthru
      _
    // Predicated region
    $region10: #{tpu_custom_call.1} parent=1 // pred_check
      _
    $region11: #{tpu_custom_call.1} parent=1 // pred_check_branch
      %38 = sbr.rel (0) target = $region13
    $region12: #{tpu_custom_call.1} parent=1 // pred_region
      _
    $region13: #{tpu_custom_call.1} parent=1 // pred_fallthru
      _
    // Predicated region
    $region14: #{tpu_custom_call.1} parent=1 // pred_check
      _
    $region15: #{tpu_custom_call.1} parent=1 // pred_check_branch
      %40 = sbr.rel (0) target = $region17
    $region16: #{tpu_custom_call.1} parent=1 // pred_region
      %s42 = ssub.s32 256, 256
      %43 = vsyncadd [#allocation8], %s42
      %s44 = sshll.u32 [#allocation9], 4
      %s45 = int_to_ptr.vmem [resolvable:$true] %s44
      %50 = dma.hbm_to_vmem [thread:$0]  %s3, 256, %s45, [#allocation8], 64, 64, 4
    $region17: #{tpu_custom_call.1} parent=1 // pred_fallthru
      _
    // Predicated region
    $region18: #{tpu_custom_call.1} parent=1 // pred_check
      _
    $region19: #{tpu_custom_call.1} parent=1 // pred_check_branch
      %52 = sbr.rel (0) target = $region21
    $region20: #{tpu_custom_call.1} parent=1 // pred_region
      _
    $region21: #{tpu_custom_call.1} parent=1 // pred_fallthru
      _
    // Predicated region
    $region22: #{tpu_custom_call.1} parent=1 // pred_check
      _
    $region23: #{tpu_custom_call.1} parent=1 // pred_check_branch
      %54 = sbr.rel (0) target = $region25
    $region24: #{tpu_custom_call.1} parent=1 // pred_region
      %55 = dma.done [#allocation5], 128
    $region25: #{tpu_custom_call.1} parent=1 // pred_fallthru
      _
    // Predicated region
    $region26: #{tpu_custom_call.1} parent=1 // pred_check
      _
    $region27: #{tpu_custom_call.1} parent=1 // pred_check_branch
      %57 = sbr.rel (0) target = $region29
    $region28: #{tpu_custom_call.1} parent=1 // pred_region
      %58 = dma.done [#allocation8], 256
    $region29: #{tpu_custom_call.1} parent=1 // pred_fallthru
      _
    // Predicated region
    $region30: #{tpu_custom_call.1} parent=1 // pred_check
      _
    $region31: #{tpu_custom_call.1} parent=1 // pred_check_branch
      %60 = sbr.rel (0) target = $region33
    $region32: #{tpu_custom_call.1} parent=1 // pred_region
      %61 = dma.done [#allocation8], 256
    $region33: #{tpu_custom_call.1} parent=1 // pred_fallthru
      _
    %v63 = vld [vmem:[#allocation4] sm:$0xf]
    %v64 = vld [vmem:[#allocation4 + $0x4] sm:$0xf]
    %v65 = vld [vmem:[#allocation7] sm:$0xf]
    %v66 = vld [vmem:[#allocation7 + $0x4] sm:$0xf]
    %v67 = vld [vmem:[#allocation7 + $0x8] sm:$0xf]
    %v68 = vld [vmem:[#allocation7 + $0xc] sm:$0xf]
    %v69 = vld [vmem:[%s2] sm:$0x1]
    %v71 = vlaneseq
    %v72 = vshrl.u32 %v71, 7
    %v73 = vsub.s32 0, %v72
    %v74 = vrot.slane %v69, %v73
    %v78 = vunpack.c.l.b16 %v63
    %v79 = vunpack.c.l.b16 %v64
    %v80 = vpack.c.b16 %v79, %v78
    %v85 = vunpack.c.l.b16 %v65
    %v86 = vunpack.c.l.b16 %v66
    %v87 = vunpack.c.l.b16 %v67
    %v88 = vunpack.c.l.b16 %v68
    %v89 = vpack.c.b16 %v86, %v85
    %v90 = vpack.c.b16 %v88, %v87
    %vm93 = vcmask 261120
    %v95 = vsel %vm93, %v80, 0
    %97 = vmatprep.subr.bf16.mxu0 0
    %98 = vmatpush1.bf16.msra.mxu0 %v89
    %99 = vmatprep.subr.bf16.mxu0 0
    %100 = vmatpush1.bf16.msra.mxu0 %v90
    %101 = vmatprep.subr.bf16.mxu0 0
    %102 = vmatpush1.bf16.msra.mxu0 0
    %103 = vmatprep.subr.bf16.mxu0 0
    %104 = vmatpush1.bf16.msra.mxu0 0
    %105 = vmatprep.subr.bf16.mxu0 0
    %106 = vmatpush1.bf16.msra.mxu0 0
    %107 = vmatprep.subr.bf16.mxu0 0
    %108 = vmatpush1.bf16.msra.mxu0 0
    %109 = vmatprep.subr.bf16.mxu0 0
    %110 = vmatpush1.bf16.msra.mxu0 0
    %111 = vmatprep.subr.bf16.mxu0 0
    %112 = vmatpush1.bf16.msra.mxu0 0
    %113 = vmatprep.subr.bf16.mxu0 0
    %114 = vmatpush1.bf16.msra.mxu0 0
    %115 = vmatprep.subr.bf16.mxu0 0
    %116 = vmatpush1.bf16.msra.mxu0 0
    %117 = vmatprep.subr.bf16.mxu0 0
    %118 = vmatpush1.bf16.msra.mxu0 0
    %119 = vmatprep.subr.bf16.mxu0 0
    %120 = vmatpush1.bf16.msra.mxu0 0
    %121 = vmatprep.subr.bf16.mxu0 0
    %122 = vmatpush1.bf16.msra.mxu0 0
    %123 = vmatprep.subr.bf16.mxu0 0
    %124 = vmatpush1.bf16.msra.mxu0 0
    %125 = vmatprep.subr.bf16.mxu0 0
    %126 = vmatpush1.bf16.msra.mxu0 0
    %127 = vmatprep.subr.bf16.mxu0 0
    %128 = vmatpush1.bf16.msra.mxu0 0
    %129 = vmatprep.mubr.bf16.mxu0 0
    %130 = vmatmul.mubr.bf16.gmra.mrb[0].mxu0 %v95
    %v131 = vpop.f32.mrb[0].mxu0
    %v132 = vadd.f32 %v74, %v131
    %v133 = vpop.f32.mrb[0].mxu0
    %v134 = vpop.f32.mrb[0].mxu0
    %v135 = vadd.f32 %v74, %v134
    %v136 = vpop.f32.mrb[0].mxu0
    %137 = vdwg.mxu0
    %v138 = vpack.c.bf16 %v135, %v132
    %v140 = vunpack.c.l.b16 %v138
    %v141 = vunpack.c.h.b16 %v138
    %v142 = vpack.c.b16 %v140, %v140
    %v143 = vpack.c.b16 %v141, %v141
    %144 = vrot.lane.b32.xlu0 %v142, 96
    %v145 = vpop.permute.xlu0 %144
    %vm146 = vcmask 64512
    %v148 = vsel %vm146, %v142, 0
    %v151 = vsel %vm146, %v145, 0
    %153 = vmatprep.subr.bf16.mxu0 0
    %154 = vmatpush1.bf16.xpose.msra.mxu0 %v151
    %155 = vmatprep.subr.bf16.mxu0 0
    %156 = vmatpush1.bf16.xpose.msra.mxu0 0
    %157 = vmatprep.subr.bf16.mxu0 0
    %158 = vmatpush1.bf16.xpose.msra.mxu0 0
    %159 = vmatprep.subr.bf16.mxu0 0
    %160 = vmatpush1.bf16.xpose.msra.mxu0 0
    %161 = vmatprep.subr.bf16.mxu0 0
    %162 = vmatpush1.bf16.xpose.msra.mxu0 0
    %163 = vmatprep.subr.bf16.mxu0 0
    %164 = vmatpush1.bf16.xpose.msra.mxu0 0
    %165 = vmatprep.subr.bf16.mxu0 0
    %166 = vmatpush1.bf16.xpose.msra.mxu0 0
    %167 = vmatprep.subr.bf16.mxu0 0
    %168 = vmatpush1.bf16.xpose.msra.mxu0 0
    %169 = vmatprep.subr.bf16.mxu0 0
    %170 = vmatpush1.bf16.xpose.msra.mxu0 0
    %171 = vmatprep.subr.bf16.mxu0 0
    %172 = vmatpush1.bf16.xpose.msra.mxu0 0
    %173 = vmatprep.subr.bf16.mxu0 0
    %174 = vmatpush1.bf16.xpose.msra.mxu0 0
    %175 = vmatprep.subr.bf16.mxu0 0
    %176 = vmatpush1.bf16.xpose.msra.mxu0 0
    %177 = vmatprep.subr.bf16.mxu0 0
    %178 = vmatpush1.bf16.xpose.msra.mxu0 0
    %179 = vmatprep.subr.bf16.mxu0 0
    %180 = vmatpush1.bf16.xpose.msra.mxu0 0
    %181 = vmatprep.subr.bf16.mxu0 0
    %182 = vmatpush1.bf16.xpose.msra.mxu0 0
    %183 = vmatprep.subr.bf16.mxu0 0
    %184 = vmatpush1.bf16.xpose.msra.mxu0 0
    %185 = vmatprep.mubr.bf16.mxu0 0
    %186 = vmatmul.mubr.bf16.gmra.mrb[0].mxu0 %v148
    %v187 = vpop.f32.mrb[0].mxu0
    %v188 = vadd.f32 0.0, %v187
    %v189 = vpop.f32.mrb[0].mxu0
    %v190 = vpop.f32.mrb[0].mxu0
    %v191 = vpop.f32.mrb[0].mxu0
    %192 = vdwg.mxu0
    %193 = vrot.lane.b32.xlu0 %v143, 96
    %v194 = vpop.permute.xlu0 %193
    %v196 = vsel %vm146, %v143, 0
    %v199 = vsel %vm146, %v194, 0
    %201 = vmatprep.subr.bf16.mxu0 0
    %202 = vmatpush1.bf16.xpose.msra.mxu0 %v199
    %203 = vmatprep.subr.bf16.mxu0 0
    %204 = vmatpush1.bf16.xpose.msra.mxu0 0
    %205 = vmatprep.subr.bf16.mxu0 0
    %206 = vmatpush1.bf16.xpose.msra.mxu0 0
    %207 = vmatprep.subr.bf16.mxu0 0
    %208 = vmatpush1.bf16.xpose.msra.mxu0 0
    %209 = vmatprep.subr.bf16.mxu0 0
    %210 = vmatpush1.bf16.xpose.msra.mxu0 0
    %211 = vmatprep.subr.bf16.mxu0 0
    %212 = vmatpush1.bf16.xpose.msra.mxu0 0
    %213 = vmatprep.subr.bf16.mxu0 0
    %214 = vmatpush1.bf16.xpose.msra.mxu0 0
    %215 = vmatprep.subr.bf16.mxu0 0
    %216 = vmatpush1.bf16.xpose.msra.mxu0 0
    %217 = vmatprep.subr.bf16.mxu0 0
    %218 = vmatpush1.bf16.xpose.msra.mxu0 0
    %219 = vmatprep.subr.bf16.mxu0 0
    %220 = vmatpush1.bf16.xpose.msra.mxu0 0
    %221 = vmatprep.subr.bf16.mxu0 0
    %222 = vmatpush1.bf16.xpose.msra.mxu0 0
    %223 = vmatprep.subr.bf16.mxu0 0
    %224 = vmatpush1.bf16.xpose.msra.mxu0 0
    %225 = vmatprep.subr.bf16.mxu0 0
    %226 = vmatpush1.bf16.xpose.msra.mxu0 0
    %227 = vmatprep.subr.bf16.mxu0 0
    %228 = vmatpush1.bf16.xpose.msra.mxu0 0
    %229 = vmatprep.subr.bf16.mxu0 0
    %230 = vmatpush1.bf16.xpose.msra.mxu0 0
    %231 = vmatprep.subr.bf16.mxu0 0
    %232 = vmatpush1.bf16.xpose.msra.mxu0 0
    %233 = vmatprep.mubr.bf16.mxu0 0
    %234 = vmatmul.mubr.bf16.gmra.mrb[0].mxu0 %v196
    %v235 = vpop.f32.mrb[0].mxu0
    %v236 = vadd.f32 0.0, %v235
    %v237 = vpop.f32.mrb[0].mxu0
    %v238 = vpop.f32.mrb[0].mxu0
    %v239 = vpop.f32.mrb[0].mxu0
    %240 = vdwg.mxu0
    %v241 = vsel %vm146, %v188, -inf
    %242 = vmax.xlane.f32.xlu0 %v241
    %v243 = vpop.xlane.xlu0 %242
    %v244 = vsel %vm146, %v236, -inf
    %245 = vmax.xlane.f32.xlu0 %v244
    %v246 = vpop.xlane.xlu0 %245
    %v247 = vsub.f32 %v188, %v243
    %v248 = vsub.f32 %v236, %v246
    %v249 = vmul.f32 %v247, 1.442695
    %v250 = vpow.pop %v249
    %v251 = vmul.f32 %v248, 1.442695
    %v252 = vpow.pop %v251
    %v253 = vsel %vm146, %v250, 0.0
    %254 = vadd.xlane.f32.xlu0 %v253
    %v255 = vpop.xlane.xlu0 %254
    %v256 = vsel %vm146, %v252, 0.0
    %257 = vadd.xlane.f32.xlu0 %v256
    %v258 = vpop.xlane.xlu0 %257
    %v259 = vrcp.pop %v255
    %v260 = vrcp.pop %v258
    %v261 = vmul.f32 %v250, %v259
    %v262 = vmul.f32 %v252, %v260
    %v263 = vpack.c.bf16 %v261, %v261
    %v264 = vpack.c.bf16 %v262, %v262
    %265 = vrot.lane.b32.xlu0 %v142, 64
    %v266 = vpop.permute.xlu0 %265
    %v268 = vsel %vm146, %v263, 0
    %vm270 = vcmask 1043456
    %v272 = vsel %vm270, %v266, 0
    %274 = vmatprep.subr.bf16.mxu0 0
    %275 = vmatpush1.bf16.msra.mxu0 %v272
    %276 = vmatprep.subr.bf16.mxu0 0
    %277 = vmatpush1.bf16.msra.mxu0 0
    %278 = vmatprep.subr.bf16.mxu0 0
    %279 = vmatpush1.bf16.msra.mxu0 0
    %280 = vmatprep.subr.bf16.mxu0 0
    %281 = vmatpush1.bf16.msra.mxu0 0
    %282 = vmatprep.subr.bf16.mxu0 0
    %283 = vmatpush1.bf16.msra.mxu0 0
    %284 = vmatprep.subr.bf16.mxu0 0
    %285 = vmatpush1.bf16.msra.mxu0 0
    %286 = vmatprep.subr.bf16.mxu0 0
    %287 = vmatpush1.bf16.msra.mxu0 0
    %288 = vmatprep.subr.bf16.mxu0 0
    %289 = vmatpush1.bf16.msra.mxu0 0
    %290 = vmatprep.subr.bf16.mxu0 0
    %291 = vmatpush1.bf16.msra.mxu0 0
    %292 = vmatprep.subr.bf16.mxu0 0
    %293 = vmatpush1.bf16.msra.mxu0 0
    %294 = vmatprep.subr.bf16.mxu0 0
    %295 = vmatpush1.bf16.msra.mxu0 0
    %296 = vmatprep.subr.bf16.mxu0 0
    %297 = vmatpush1.bf16.msra.mxu0 0
    %298 = vmatprep.subr.bf16.mxu0 0
    %299 = vmatpush1.bf16.msra.mxu0 0
    %300 = vmatprep.subr.bf16.mxu0 0
    %301 = vmatpush1.bf16.msra.mxu0 0
    %302 = vmatprep.subr.bf16.mxu0 0
    %303 = vmatpush1.bf16.msra.mxu0 0
    %304 = vmatprep.subr.bf16.mxu0 0
    %305 = vmatpush1.bf16.msra.mxu0 0
    %306 = vmatprep.mubr.bf16.mxu0 0
    %307 = vmatmul.mubr.bf16.gmra.mrb[0].mxu0 %v268
    %v308 = vpop.f32.mrb[0].mxu0
    %v309 = vadd.f32 0.0, %v308
    %v310 = vpop.f32.mrb[0].mxu0
    %v311 = vpop.f32.mrb[0].mxu0
    %v312 = vpop.f32.mrb[0].mxu0
    %313 = vdwg.mxu0
    %314 = vrot.lane.b32.xlu0 %v143, 64
    %v315 = vpop.permute.xlu0 %314
    %v317 = vsel %vm146, %v264, 0
    %v320 = vsel %vm270, %v315, 0
    %322 = vmatprep.subr.bf16.mxu0 0
    %323 = vmatpush1.bf16.msra.mxu0 %v320
    %324 = vmatprep.subr.bf16.mxu0 0
    %325 = vmatpush1.bf16.msra.mxu0 0
    %326 = vmatprep.subr.bf16.mxu0 0
    %327 = vmatpush1.bf16.msra.mxu0 0
    %328 = vmatprep.subr.bf16.mxu0 0
    %329 = vmatpush1.bf16.msra.mxu0 0
    %330 = vmatprep.subr.bf16.mxu0 0
    %331 = vmatpush1.bf16.msra.mxu0 0
    %332 = vmatprep.subr.bf16.mxu0 0
    %333 = vmatpush1.bf16.msra.mxu0 0
    %334 = vmatprep.subr.bf16.mxu0 0
    %335 = vmatpush1.bf16.msra.mxu0 0
    %336 = vmatprep.subr.bf16.mxu0 0
    %337 = vmatpush1.bf16.msra.mxu0 0
    %338 = vmatprep.subr.bf16.mxu0 0
    %339 = vmatpush1.bf16.msra.mxu0 0
    %340 = vmatprep.subr.bf16.mxu0 0
    %341 = vmatpush1.bf16.msra.mxu0 0
    %342 = vmatprep.subr.bf16.mxu0 0
    %343 = vmatpush1.bf16.msra.mxu0 0
    %344 = vmatprep.subr.bf16.mxu0 0
    %345 = vmatpush1.bf16.msra.mxu0 0
    %346 = vmatprep.subr.bf16.mxu0 0
    %347 = vmatpush1.bf16.msra.mxu0 0
    %348 = vmatprep.subr.bf16.mxu0 0
    %349 = vmatpush1.bf16.msra.mxu0 0
    %350 = vmatprep.subr.bf16.mxu0 0
    %351 = vmatpush1.bf16.msra.mxu0 0
    %352 = vmatprep.subr.bf16.mxu0 0
    %353 = vmatpush1.bf16.msra.mxu0 0
    %354 = vmatprep.mubr.bf16.mxu0 0
    %355 = vmatmul.mubr.bf16.gmra.mrb[0].mxu0 %v317
    %v356 = vpop.f32.mrb[0].mxu0
    %v357 = vadd.f32 0.0, %v356
    %v358 = vpop.f32.mrb[0].mxu0
    %v359 = vpop.f32.mrb[0].mxu0
    %v360 = vpop.f32.mrb[0].mxu0
    %361 = vdwg.mxu0
    %v362 = vpack.c.bf16 %v357, %v309
    %363 = vst.msk [vmem:[#allocation3] sm:$0xff] %vm146, %v362
    %364 = vrot.lane.b32.xlu0 %v142, 120
    %v365 = vpop.permute.xlu0 %364
    %366 = vrot.lane.b32.xlu0 %v142, 88
    %v367 = vpop.permute.xlu0 %366
    %v369 = vsel %vm146, %v365, 0
    %v372 = vsel %vm146, %v367, 0
    %374 = vmatprep.subr.bf16.mxu0 0
    %375 = vmatpush1.bf16.xpose.msra.mxu0 %v372
    %376 = vmatprep.subr.bf16.mxu0 0
    %377 = vmatpush1.bf16.xpose.msra.mxu0 0
    %378 = vmatprep.subr.bf16.mxu0 0
    %379 = vmatpush1.bf16.xpose.msra.mxu0 0
    %380 = vmatprep.subr.bf16.mxu0 0
    %381 = vmatpush1.bf16.xpose.msra.mxu0 0
    %382 = vmatprep.subr.bf16.mxu0 0
    %383 = vmatpush1.bf16.xpose.msra.mxu0 0
    %384 = vmatprep.subr.bf16.mxu0 0
    %385 = vmatpush1.bf16.xpose.msra.mxu0 0
    %386 = vmatprep.subr.bf16.mxu0 0
    %387 = vmatpush1.bf16.xpose.msra.mxu0 0
    %388 = vmatprep.subr.bf16.mxu0 0
    %389 = vmatpush1.bf16.xpose.msra.mxu0 0
    %390 = vmatprep.subr.bf16.mxu0 0
    %391 = vmatpush1.bf16.xpose.msra.mxu0 0
    %392 = vmatprep.subr.bf16.mxu0 0
    %393 = vmatpush1.bf16.xpose.msra.mxu0 0
    %394 = vmatprep.subr.bf16.mxu0 0
    %395 = vmatpush1.bf16.xpose.msra.mxu0 0
    %396 = vmatprep.subr.bf16.mxu0 0
    %397 = vmatpush1.bf16.xpose.msra.mxu0 0
    %398 = vmatprep.subr.bf16.mxu0 0
    %399 = vmatpush1.bf16.xpose.msra.mxu0 0
    %400 = vmatprep.subr.bf16.mxu0 0
    %401 = vmatpush1.bf16.xpose.msra.mxu0 0
    %402 = vmatprep.subr.bf16.mxu0 0
    %403 = vmatpush1.bf16.xpose.msra.mxu0 0
    %404 = vmatprep.subr.bf16.mxu0 0
    %405 = vmatpush1.bf16.xpose.msra.mxu0 0
    %406 = vmatprep.mubr.bf16.mxu0 0
    %407 = vmatmul.mubr.bf16.gmra.mrb[0].mxu0 %v369
    %v408 = vpop.f32.mrb[0].mxu0
    %v409 = vadd.f32 0.0, %v408
    %v410 = vpop.f32.mrb[0].mxu0
    %v411 = vpop.f32.mrb[0].mxu0
    %v412 = vpop.f32.mrb[0].mxu0
    %413 = vdwg.mxu0
    %414 = vrot.lane.b32.xlu0 %v143, 120
    %v415 = vpop.permute.xlu0 %414
    %416 = vrot.lane.b32.xlu0 %v143, 88
    %v417 = vpop.permute.xlu0 %416
    %v419 = vsel %vm146, %v415, 0
    %v422 = vsel %vm146, %v417, 0
    %424 = vmatprep.subr.bf16.mxu0 0
    %425 = vmatpush1.bf16.xpose.msra.mxu0 %v422
    %426 = vmatprep.subr.bf16.mxu0 0
    %427 = vmatpush1.bf16.xpose.msra.mxu0 0
    %428 = vmatprep.subr.bf16.mxu0 0
    %429 = vmatpush1.bf16.xpose.msra.mxu0 0
    %430 = vmatprep.subr.bf16.mxu0 0
    %431 = vmatpush1.bf16.xpose.msra.mxu0 0
    %432 = vmatprep.subr.bf16.mxu0 0
    %433 = vmatpush1.bf16.xpose.msra.mxu0 0
    %434 = vmatprep.subr.bf16.mxu0 0
    %435 = vmatpush1.bf16.xpose.msra.mxu0 0
    %436 = vmatprep.subr.bf16.mxu0 0
    %437 = vmatpush1.bf16.xpose.msra.mxu0 0
    %438 = vmatprep.subr.bf16.mxu0 0
    %439 = vmatpush1.bf16.xpose.msra.mxu0 0
    %440 = vmatprep.subr.bf16.mxu0 0
    %441 = vmatpush1.bf16.xpose.msra.mxu0 0
    %442 = vmatprep.subr.bf16.mxu0 0
    %443 = vmatpush1.bf16.xpose.msra.mxu0 0
    %444 = vmatprep.subr.bf16.mxu0 0
    %445 = vmatpush1.bf16.xpose.msra.mxu0 0
    %446 = vmatprep.subr.bf16.mxu0 0
    %447 = vmatpush1.bf16.xpose.msra.mxu0 0
    %448 = vmatprep.subr.bf16.mxu0 0
    %449 = vmatpush1.bf16.xpose.msra.mxu0 0
    %450 = vmatprep.subr.bf16.mxu0 0
    %451 = vmatpush1.bf16.xpose.msra.mxu0 0
    %452 = vmatprep.subr.bf16.mxu0 0
    %453 = vmatpush1.bf16.xpose.msra.mxu0 0
    %454 = vmatprep.subr.bf16.mxu0 0
    %455 = vmatpush1.bf16.xpose.msra.mxu0 0
    %456 = vmatprep.mubr.bf16.mxu0 0
    %457 = vmatmul.mubr.bf16.gmra.mrb[0].mxu0 %v419
    %v458 = vpop.f32.mrb[0].mxu0
    %v459 = vadd.f32 0.0, %v458
    %v460 = vpop.f32.mrb[0].mxu0
    %v461 = vpop.f32.mrb[0].mxu0
    %v462 = vpop.f32.mrb[0].mxu0
    %463 = vdwg.mxu0
    %v464 = vsel %vm146, %v409, -inf
    %465 = vmax.xlane.f32.xlu0 %v464
    %v466 = vpop.xlane.xlu0 %465
    %v467 = vsel %vm146, %v459, -inf
    %468 = vmax.xlane.f32.xlu0 %v467
    %v469 = vpop.xlane.xlu0 %468
    %v470 = vsub.f32 %v409, %v466
    %v471 = vsub.f32 %v459, %v469
    %v472 = vmul.f32 %v470, 1.442695
    %v473 = vpow.pop %v472
    %v474 = vmul.f32 %v471, 1.442695
    %v475 = vpow.pop %v474
    %v476 = vsel %vm146, %v473, 0.0
    %477 = vadd.xlane.f32.xlu0 %v476
    %v478 = vpop.xlane.xlu0 %477
    %v479 = vsel %vm146, %v475, 0.0
    %480 = vadd.xlane.f32.xlu0 %v479
    %v481 = vpop.xlane.xlu0 %480
    %v482 = vrcp.pop %v478
    %v483 = vrcp.pop %v481
    %v484 = vmul.f32 %v473, %v482
    %v485 = vmul.f32 %v475, %v483
    %v486 = vpack.c.bf16 %v484, %v484
    %v487 = vpack.c.bf16 %v485, %v485
    %488 = vrot.lane.b32.xlu0 %v142, 56
    %v489 = vpop.permute.xlu0 %488
    %v491 = vsel %vm146, %v486, 0
    %v494 = vsel %vm270, %v489, 0
    %496 = vmatprep.subr.bf16.mxu0 0
    %497 = vmatpush1.bf16.msra.mxu0 %v494
    %498 = vmatprep.subr.bf16.mxu0 0
    %499 = vmatpush1.bf16.msra.mxu0 0
    %500 = vmatprep.subr.bf16.mxu0 0
    %501 = vmatpush1.bf16.msra.mxu0 0
    %502 = vmatprep.subr.bf16.mxu0 0
    %503 = vmatpush1.bf16.msra.mxu0 0
    %504 = vmatprep.subr.bf16.mxu0 0
    %505 = vmatpush1.bf16.msra.mxu0 0
    %506 = vmatprep.subr.bf16.mxu0 0
    %507 = vmatpush1.bf16.msra.mxu0 0
    %508 = vmatprep.subr.bf16.mxu0 0
    %509 = vmatpush1.bf16.msra.mxu0 0
    %510 = vmatprep.subr.bf16.mxu0 0
    %511 = vmatpush1.bf16.msra.mxu0 0
    %512 = vmatprep.subr.bf16.mxu0 0
    %513 = vmatpush1.bf16.msra.mxu0 0
    %514 = vmatprep.subr.bf16.mxu0 0
    %515 = vmatpush1.bf16.msra.mxu0 0
    %516 = vmatprep.subr.bf16.mxu0 0
    %517 = vmatpush1.bf16.msra.mxu0 0
    %518 = vmatprep.subr.bf16.mxu0 0
    %519 = vmatpush1.bf16.msra.mxu0 0
    %520 = vmatprep.subr.bf16.mxu0 0
    %521 = vmatpush1.bf16.msra.mxu0 0
    %522 = vmatprep.subr.bf16.mxu0 0
    %523 = vmatpush1.bf16.msra.mxu0 0
    %524 = vmatprep.subr.bf16.mxu0 0
    %525 = vmatpush1.bf16.msra.mxu0 0
    %526 = vmatprep.subr.bf16.mxu0 0
    %527 = vmatpush1.bf16.msra.mxu0 0
    %528 = vmatprep.mubr.bf16.mxu0 0
    %529 = vmatmul.mubr.bf16.gmra.mrb[0].mxu0 %v491
    %v530 = vpop.f32.mrb[0].mxu0
    %v531 = vadd.f32 0.0, %v530
    %v532 = vpop.f32.mrb[0].mxu0
    %v533 = vpop.f32.mrb[0].mxu0
    %v534 = vpop.f32.mrb[0].mxu0
    %535 = vdwg.mxu0
    %536 = vrot.lane.b32.xlu0 %v143, 56
    %v537 = vpop.permute.xlu0 %536
    %v539 = vsel %vm146, %v487, 0
    %v542 = vsel %vm270, %v537, 0
    %544 = vmatprep.subr.bf16.mxu0 0
    %545 = vmatpush1.bf16.msra.mxu0 %v542
    %546 = vmatprep.subr.bf16.mxu0 0
    %547 = vmatpush1.bf16.msra.mxu0 0
    %548 = vmatprep.subr.bf16.mxu0 0
    %549 = vmatpush1.bf16.msra.mxu0 0
    %550 = vmatprep.subr.bf16.mxu0 0
    %551 = vmatpush1.bf16.msra.mxu0 0
    %552 = vmatprep.subr.bf16.mxu0 0
    %553 = vmatpush1.bf16.msra.mxu0 0
    %554 = vmatprep.subr.bf16.mxu0 0
    %555 = vmatpush1.bf16.msra.mxu0 0
    %556 = vmatprep.subr.bf16.mxu0 0
    %557 = vmatpush1.bf16.msra.mxu0 0
    %558 = vmatprep.subr.bf16.mxu0 0
    %559 = vmatpush1.bf16.msra.mxu0 0
    %560 = vmatprep.subr.bf16.mxu0 0
    %561 = vmatpush1.bf16.msra.mxu0 0
    %562 = vmatprep.subr.bf16.mxu0 0
    %563 = vmatpush1.bf16.msra.mxu0 0
    %564 = vmatprep.subr.bf16.mxu0 0
    %565 = vmatpush1.bf16.msra.mxu0 0
    %566 = vmatprep.subr.bf16.mxu0 0
    %567 = vmatpush1.bf16.msra.mxu0 0
    %568 = vmatprep.subr.bf16.mxu0 0
    %569 = vmatpush1.bf16.msra.mxu0 0
    %570 = vmatprep.subr.bf16.mxu0 0
    %571 = vmatpush1.bf16.msra.mxu0 0
    %572 = vmatprep.subr.bf16.mxu0 0
    %573 = vmatpush1.bf16.msra.mxu0 0
    %574 = vmatprep.subr.bf16.mxu0 0
    %575 = vmatpush1.bf16.msra.mxu0 0
    %576 = vmatprep.mubr.bf16.mxu0 0
    %577 = vmatmul.mubr.bf16.gmra.mrb[0].mxu0 %v539
    %v578 = vpop.f32.mrb[0].mxu0
    %v579 = vadd.f32 0.0, %v578
    %v580 = vpop.f32.mrb[0].mxu0
    %v581 = vpop.f32.mrb[0].mxu0
    %v582 = vpop.f32.mrb[0].mxu0
    %583 = vdwg.mxu0
    %v584 = vpack.c.bf16 %v579, %v531
    %586 = vrot.lane.b32.xlu0 %v584, 8
    %v587 = vpop.permute.xlu0 %586
    %vm589 = vcmask 130112
    %590 = vst.msk [vmem:[#allocation3] sm:$0xff] %vm589, %v587
    %591 = vrot.lane.b32.xlu0 %v142, 112
    %v592 = vpop.permute.xlu0 %591
    %593 = vrot.lane.b32.xlu0 %v142, 80
    %v594 = vpop.permute.xlu0 %593
    %v596 = vsel %vm146, %v592, 0
    %v599 = vsel %vm146, %v594, 0
    %601 = vmatprep.subr.bf16.mxu0 0
    %602 = vmatpush1.bf16.xpose.msra.mxu0 %v599
    %603 = vmatprep.subr.bf16.mxu0 0
    %604 = vmatpush1.bf16.xpose.msra.mxu0 0
    %605 = vmatprep.subr.bf16.mxu0 0
    %606 = vmatpush1.bf16.xpose.msra.mxu0 0
    %607 = vmatprep.subr.bf16.mxu0 0
    %608 = vmatpush1.bf16.xpose.msra.mxu0 0
    %609 = vmatprep.subr.bf16.mxu0 0
    %610 = vmatpush1.bf16.xpose.msra.mxu0 0
    %611 = vmatprep.subr.bf16.mxu0 0
    %612 = vmatpush1.bf16.xpose.msra.mxu0 0
    %613 = vmatprep.subr.bf16.mxu0 0
    %614 = vmatpush1.bf16.xpose.msra.mxu0 0
    %615 = vmatprep.subr.bf16.mxu0 0
    %616 = vmatpush1.bf16.xpose.msra.mxu0 0
    %617 = vmatprep.subr.bf16.mxu0 0
    %618 = vmatpush1.bf16.xpose.msra.mxu0 0
    %619 = vmatprep.subr.bf16.mxu0 0
    %620 = vmatpush1.bf16.xpose.msra.mxu0 0
    %621 = vmatprep.subr.bf16.mxu0 0
    %622 = vmatpush1.bf16.xpose.msra.mxu0 0
    %623 = vmatprep.subr.bf16.mxu0 0
    %624 = vmatpush1.bf16.xpose.msra.mxu0 0
    %625 = vmatprep.subr.bf16.mxu0 0
    %626 = vmatpush1.bf16.xpose.msra.mxu0 0
    %627 = vmatprep.subr.bf16.mxu0 0
    %628 = vmatpush1.bf16.xpose.msra.mxu0 0
    %629 = vmatprep.subr.bf16.mxu0 0
    %630 = vmatpush1.bf16.xpose.msra.mxu0 0
    %631 = vmatprep.subr.bf16.mxu0 0
    %632 = vmatpush1.bf16.xpose.msra.mxu0 0
    %633 = vmatprep.mubr.bf16.mxu0 0
    %634 = vmatmul.mubr.bf16.gmra.mrb[0].mxu0 %v596
    %v635 = vpop.f32.mrb[0].mxu0
    %v636 = vadd.f32 0.0, %v635
    %v637 = vpop.f32.mrb[0].mxu0
    %v638 = vpop.f32.mrb[0].mxu0
    %v639 = vpop.f32.mrb[0].mxu0
    %640 = vdwg.mxu0
    %641 = vrot.lane.b32.xlu0 %v143, 112
    %v642 = vpop.permute.xlu0 %641
    %643 = vrot.lane.b32.xlu0 %v143, 80
    %v644 = vpop.permute.xlu0 %643
    %v646 = vsel %vm146, %v642, 0
    %v649 = vsel %vm146, %v644, 0
    %651 = vmatprep.subr.bf16.mxu0 0
    %652 = vmatpush1.bf16.xpose.msra.mxu0 %v649
    %653 = vmatprep.subr.bf16.mxu0 0
    %654 = vmatpush1.bf16.xpose.msra.mxu0 0
    %655 = vmatprep.subr.bf16.mxu0 0
    %656 = vmatpush1.bf16.xpose.msra.mxu0 0
    %657 = vmatprep.subr.bf16.mxu0 0
    %658 = vmatpush1.bf16.xpose.msra.mxu0 0
    %659 = vmatprep.subr.bf16.mxu0 0
    %660 = vmatpush1.bf16.xpose.msra.mxu0 0
    %661 = vmatprep.subr.bf16.mxu0 0
    %662 = vmatpush1.bf16.xpose.msra.mxu0 0
    %663 = vmatprep.subr.bf16.mxu0 0
    %664 = vmatpush1.bf16.xpose.msra.mxu0 0
    %665 = vmatprep.subr.bf16.mxu0 0
    %666 = vmatpush1.bf16.xpose.msra.mxu0 0
    %667 = vmatprep.subr.bf16.mxu0 0
    %668 = vmatpush1.bf16.xpose.msra.mxu0 0
    %669 = vmatprep.subr.bf16.mxu0 0
    %670 = vmatpush1.bf16.xpose.msra.mxu0 0
    %671 = vmatprep.subr.bf16.mxu0 0
    %672 = vmatpush1.bf16.xpose.msra.mxu0 0
    %673 = vmatprep.subr.bf16.mxu0 0
    %674 = vmatpush1.bf16.xpose.msra.mxu0 0
    %675 = vmatprep.subr.bf16.mxu0 0
    %676 = vmatpush1.bf16.xpose.msra.mxu0 0
    %677 = vmatprep.subr.bf16.mxu0 0
    %678 = vmatpush1.bf16.xpose.msra.mxu0 0
    %679 = vmatprep.subr.bf16.mxu0 0
    %680 = vmatpush1.bf16.xpose.msra.mxu0 0
    %681 = vmatprep.subr.bf16.mxu0 0
    %682 = vmatpush1.bf16.xpose.msra.mxu0 0
    %683 = vmatprep.mubr.bf16.mxu0 0
    %684 = vmatmul.mubr.bf16.gmra.mrb[0].mxu0 %v646
    %v685 = vpop.f32.mrb[0].mxu0
    %v686 = vadd.f32 0.0, %v685
    %v687 = vpop.f32.mrb[0].mxu0
    %v688 = vpop.f32.mrb[0].mxu0
    %v689 = vpop.f32.mrb[0].mxu0
    %690 = vdwg.mxu0
    %v691 = vsel %vm146, %v636, -inf
    %692 = vmax.xlane.f32.xlu0 %v691
    %v693 = vpop.xlane.xlu0 %692
    %v694 = vsel %vm146, %v686, -inf
    %695 = vmax.xlane.f32.xlu0 %v694
    %v696 = vpop.xlane.xlu0 %695
    %v697 = vsub.f32 %v636, %v693
    %v698 = vsub.f32 %v686, %v696
    %v699 = vmul.f32 %v697, 1.442695
    %v700 = vpow.pop %v699
    %v701 = vmul.f32 %v698, 1.442695
    %v702 = vpow.pop %v701
    %v703 = vsel %vm146, %v700, 0.0
    %704 = vadd.xlane.f32.xlu0 %v703
    %v705 = vpop.xlane.xlu0 %704
    %v706 = vsel %vm146, %v702, 0.0
    %707 = vadd.xlane.f32.xlu0 %v706
    %v708 = vpop.xlane.xlu0 %707
    %v709 = vrcp.pop %v705
    %v710 = vrcp.pop %v708
    %v711 = vmul.f32 %v700, %v709
    %v712 = vmul.f32 %v702, %v710
    %v713 = vpack.c.bf16 %v711, %v711
    %v714 = vpack.c.bf16 %v712, %v712
    %715 = vrot.lane.b32.xlu0 %v142, 48
    %v716 = vpop.permute.xlu0 %715
    %v718 = vsel %vm146, %v713, 0
    %v721 = vsel %vm270, %v716, 0
    %723 = vmatprep.subr.bf16.mxu0 0
    %724 = vmatpush1.bf16.msra.mxu0 %v721
    %725 = vmatprep.subr.bf16.mxu0 0
    %726 = vmatpush1.bf16.msra.mxu0 0
    %727 = vmatprep.subr.bf16.mxu0 0
    %728 = vmatpush1.bf16.msra.mxu0 0
    %729 = vmatprep.subr.bf16.mxu0 0
    %730 = vmatpush1.bf16.msra.mxu0 0
    %731 = vmatprep.subr.bf16.mxu0 0
    %732 = vmatpush1.bf16.msra.mxu0 0
    %733 = vmatprep.subr.bf16.mxu0 0
    %734 = vmatpush1.bf16.msra.mxu0 0
    %735 = vmatprep.subr.bf16.mxu0 0
    %736 = vmatpush1.bf16.msra.mxu0 0
    %737 = vmatprep.subr.bf16.mxu0 0
    %738 = vmatpush1.bf16.msra.mxu0 0
    %739 = vmatprep.subr.bf16.mxu0 0
    %740 = vmatpush1.bf16.msra.mxu0 0
    %741 = vmatprep.subr.bf16.mxu0 0
    %742 = vmatpush1.bf16.msra.mxu0 0
    %743 = vmatprep.subr.bf16.mxu0 0
    %744 = vmatpush1.bf16.msra.mxu0 0
    %745 = vmatprep.subr.bf16.mxu0 0
    %746 = vmatpush1.bf16.msra.mxu0 0
    %747 = vmatprep.subr.bf16.mxu0 0
    %748 = vmatpush1.bf16.msra.mxu0 0
    %749 = vmatprep.subr.bf16.mxu0 0
    %750 = vmatpush1.bf16.msra.mxu0 0
    %751 = vmatprep.subr.bf16.mxu0 0
    %752 = vmatpush1.bf16.msra.mxu0 0
    %753 = vmatprep.subr.bf16.mxu0 0
    %754 = vmatpush1.bf16.msra.mxu0 0
    %755 = vmatprep.mubr.bf16.mxu0 0
    %756 = vmatmul.mubr.bf16.gmra.mrb[0].mxu0 %v718
    %v757 = vpop.f32.mrb[0].mxu0
    %v758 = vadd.f32 0.0, %v757
    %v759 = vpop.f32.mrb[0].mxu0
    %v760 = vpop.f32.mrb[0].mxu0
    %v761 = vpop.f32.mrb[0].mxu0
    %762 = vdwg.mxu0
    %763 = vrot.lane.b32.xlu0 %v143, 48
    %v764 = vpop.permute.xlu0 %763
    %v766 = vsel %vm146, %v714, 0
    %v769 = vsel %vm270, %v764, 0
    %771 = vmatprep.subr.bf16.mxu0 0
    %772 = vmatpush1.bf16.msra.mxu0 %v769
    %773 = vmatprep.subr.bf16.mxu0 0
    %774 = vmatpush1.bf16.msra.mxu0 0
    %775 = vmatprep.subr.bf16.mxu0 0
    %776 = vmatpush1.bf16.msra.mxu0 0
    %777 = vmatprep.subr.bf16.mxu0 0
    %778 = vmatpush1.bf16.msra.mxu0 0
    %779 = vmatprep.subr.bf16.mxu0 0
    %780 = vmatpush1.bf16.msra.mxu0 0
    %781 = vmatprep.subr.bf16.mxu0 0
    %782 = vmatpush1.bf16.msra.mxu0 0
    %783 = vmatprep.subr.bf16.mxu0 0
    %784 = vmatpush1.bf16.msra.mxu0 0
    %785 = vmatprep.subr.bf16.mxu0 0
    %786 = vmatpush1.bf16.msra.mxu0 0
    %787 = vmatprep.subr.bf16.mxu0 0
    %788 = vmatpush1.bf16.msra.mxu0 0
    %789 = vmatprep.subr.bf16.mxu0 0
    %790 = vmatpush1.bf16.msra.mxu0 0
    %791 = vmatprep.subr.bf16.mxu0 0
    %792 = vmatpush1.bf16.msra.mxu0 0
    %793 = vmatprep.subr.bf16.mxu0 0
    %794 = vmatpush1.bf16.msra.mxu0 0
    %795 = vmatprep.subr.bf16.mxu0 0
    %796 = vmatpush1.bf16.msra.mxu0 0
    %797 = vmatprep.subr.bf16.mxu0 0
    %798 = vmatpush1.bf16.msra.mxu0 0
    %799 = vmatprep.subr.bf16.mxu0 0
    %800 = vmatpush1.bf16.msra.mxu0 0
    %801 = vmatprep.subr.bf16.mxu0 0
    %802 = vmatpush1.bf16.msra.mxu0 0
    %803 = vmatprep.mubr.bf16.mxu0 0
    %804 = vmatmul.mubr.bf16.gmra.mrb[0].mxu0 %v766
    %v805 = vpop.f32.mrb[0].mxu0
    %v806 = vadd.f32 0.0, %v805
    %v807 = vpop.f32.mrb[0].mxu0
    %v808 = vpop.f32.mrb[0].mxu0
    %v809 = vpop.f32.mrb[0].mxu0
    %810 = vdwg.mxu0
    %v811 = vpack.c.bf16 %v806, %v758
    %813 = vrot.lane.b32.xlu0 %v811, 16
    %v814 = vpop.permute.xlu0 %813
    %vm816 = vcmask 195712
    %817 = vst.msk [vmem:[#allocation3] sm:$0xff] %vm816, %v814
    %818 = vrot.lane.b32.xlu0 %v142, 104
    %v819 = vpop.permute.xlu0 %818
    %820 = vrot.lane.b32.xlu0 %v142, 72
    %v821 = vpop.permute.xlu0 %820
    %v823 = vsel %vm146, %v819, 0
    %v826 = vsel %vm146, %v821, 0
    %828 = vmatprep.subr.bf16.mxu0 0
    %829 = vmatpush1.bf16.xpose.msra.mxu0 %v826
    %830 = vmatprep.subr.bf16.mxu0 0
    %831 = vmatpush1.bf16.xpose.msra.mxu0 0
    %832 = vmatprep.subr.bf16.mxu0 0
    %833 = vmatpush1.bf16.xpose.msra.mxu0 0
    %834 = vmatprep.subr.bf16.mxu0 0
    %835 = vmatpush1.bf16.xpose.msra.mxu0 0
    %836 = vmatprep.subr.bf16.mxu0 0
    %837 = vmatpush1.bf16.xpose.msra.mxu0 0
    %838 = vmatprep.subr.bf16.mxu0 0
    %839 = vmatpush1.bf16.xpose.msra.mxu0 0
    %840 = vmatprep.subr.bf16.mxu0 0
    %841 = vmatpush1.bf16.xpose.msra.mxu0 0
    %842 = vmatprep.subr.bf16.mxu0 0
    %843 = vmatpush1.bf16.xpose.msra.mxu0 0
    %844 = vmatprep.subr.bf16.mxu0 0
    %845 = vmatpush1.bf16.xpose.msra.mxu0 0
    %846 = vmatprep.subr.bf16.mxu0 0
    %847 = vmatpush1.bf16.xpose.msra.mxu0 0
    %848 = vmatprep.subr.bf16.mxu0 0
    %849 = vmatpush1.bf16.xpose.msra.mxu0 0
    %850 = vmatprep.subr.bf16.mxu0 0
    %851 = vmatpush1.bf16.xpose.msra.mxu0 0
    %852 = vmatprep.subr.bf16.mxu0 0
    %853 = vmatpush1.bf16.xpose.msra.mxu0 0
    %854 = vmatprep.subr.bf16.mxu0 0
    %855 = vmatpush1.bf16.xpose.msra.mxu0 0
    %856 = vmatprep.subr.bf16.mxu0 0
    %857 = vmatpush1.bf16.xpose.msra.mxu0 0
    %858 = vmatprep.subr.bf16.mxu0 0
    %859 = vmatpush1.bf16.xpose.msra.mxu0 0
    %860 = vmatprep.mubr.bf16.mxu0 0
    %861 = vmatmul.mubr.bf16.gmra.mrb[0].mxu0 %v823
    %v862 = vpop.f32.mrb[0].mxu0
    %v863 = vadd.f32 0.0, %v862
    %v864 = vpop.f32.mrb[0].mxu0
    %v865 = vpop.f32.mrb[0].mxu0
    %v866 = vpop.f32.mrb[0].mxu0
    %867 = vdwg.mxu0
    %868 = vrot.lane.b32.xlu0 %v143, 104
    %v869 = vpop.permute.xlu0 %868
    %870 = vrot.lane.b32.xlu0 %v143, 72
    %v871 = vpop.permute.xlu0 %870
    %v873 = vsel %vm146, %v869, 0
    %v876 = vsel %vm146, %v871, 0
    %878 = vmatprep.subr.bf16.mxu0 0
    %879 = vmatpush1.bf16.xpose.msra.mxu0 %v876
    %880 = vmatprep.subr.bf16.mxu0 0
    %881 = vmatpush1.bf16.xpose.msra.mxu0 0
    %882 = vmatprep.subr.bf16.mxu0 0
    %883 = vmatpush1.bf16.xpose.msra.mxu0 0
    %884 = vmatprep.subr.bf16.mxu0 0
    %885 = vmatpush1.bf16.xpose.msra.mxu0 0
    %886 = vmatprep.subr.bf16.mxu0 0
    %887 = vmatpush1.bf16.xpose.msra.mxu0 0
    %888 = vmatprep.subr.bf16.mxu0 0
    %889 = vmatpush1.bf16.xpose.msra.mxu0 0
    %890 = vmatprep.subr.bf16.mxu0 0
    %891 = vmatpush1.bf16.xpose.msra.mxu0 0
    %892 = vmatprep.subr.bf16.mxu0 0
    %893 = vmatpush1.bf16.xpose.msra.mxu0 0
    %894 = vmatprep.subr.bf16.mxu0 0
    %895 = vmatpush1.bf16.xpose.msra.mxu0 0
    %896 = vmatprep.subr.bf16.mxu0 0
    %897 = vmatpush1.bf16.xpose.msra.mxu0 0
    %898 = vmatprep.subr.bf16.mxu0 0
    %899 = vmatpush1.bf16.xpose.msra.mxu0 0
    %900 = vmatprep.subr.bf16.mxu0 0
    %901 = vmatpush1.bf16.xpose.msra.mxu0 0
    %902 = vmatprep.subr.bf16.mxu0 0
    %903 = vmatpush1.bf16.xpose.msra.mxu0 0
    %904 = vmatprep.subr.bf16.mxu0 0
    %905 = vmatpush1.bf16.xpose.msra.mxu0 0
    %906 = vmatprep.subr.bf16.mxu0 0
    %907 = vmatpush1.bf16.xpose.msra.mxu0 0
    %908 = vmatprep.subr.bf16.mxu0 0
    %909 = vmatpush1.bf16.xpose.msra.mxu0 0
    %910 = vmatprep.mubr.bf16.mxu0 0
    %911 = vmatmul.mubr.bf16.gmra.mrb[0].mxu0 %v873
    %v912 = vpop.f32.mrb[0].mxu0
    %v913 = vadd.f32 0.0, %v912
    %v914 = vpop.f32.mrb[0].mxu0
    %v915 = vpop.f32.mrb[0].mxu0
    %v916 = vpop.f32.mrb[0].mxu0
    %917 = vdwg.mxu0
    %v918 = vsel %vm146, %v863, -inf
    %919 = vmax.xlane.f32.xlu0 %v918
    %v920 = vpop.xlane.xlu0 %919
    %v921 = vsel %vm146, %v913, -inf
    %922 = vmax.xlane.f32.xlu0 %v921
    %v923 = vpop.xlane.xlu0 %922
    %v924 = vsub.f32 %v863, %v920
    %v925 = vsub.f32 %v913, %v923
    %v926 = vmul.f32 %v924, 1.442695
    %v927 = vpow.pop %v926
    %v928 = vmul.f32 %v925, 1.442695
    %v929 = vpow.pop %v928
    %v930 = vsel %vm146, %v927, 0.0
    %931 = vadd.xlane.f32.xlu0 %v930
    %v932 = vpop.xlane.xlu0 %931
    %v933 = vsel %vm146, %v929, 0.0
    %934 = vadd.xlane.f32.xlu0 %v933
    %v935 = vpop.xlane.xlu0 %934
    %v936 = vrcp.pop %v932
    %v937 = vrcp.pop %v935
    %v938 = vmul.f32 %v927, %v936
    %v939 = vmul.f32 %v929, %v937
    %v940 = vpack.c.bf16 %v938, %v938
    %v941 = vpack.c.bf16 %v939, %v939
    %942 = vrot.lane.b32.xlu0 %v142, 40
    %v943 = vpop.permute.xlu0 %942
    %v945 = vsel %vm146, %v940, 0
    %v948 = vsel %vm270, %v943, 0
    %950 = vmatprep.subr.bf16.mxu0 0
    %951 = vmatpush1.bf16.msra.mxu0 %v948
    %952 = vmatprep.subr.bf16.mxu0 0
    %953 = vmatpush1.bf16.msra.mxu0 0
    %954 = vmatprep.subr.bf16.mxu0 0
    %955 = vmatpush1.bf16.msra.mxu0 0
    %956 = vmatprep.subr.bf16.mxu0 0
    %957 = vmatpush1.bf16.msra.mxu0 0
    %958 = vmatprep.subr.bf16.mxu0 0
    %959 = vmatpush1.bf16.msra.mxu0 0
    %960 = vmatprep.subr.bf16.mxu0 0
    %961 = vmatpush1.bf16.msra.mxu0 0
    %962 = vmatprep.subr.bf16.mxu0 0
    %963 = vmatpush1.bf16.msra.mxu0 0
    %964 = vmatprep.subr.bf16.mxu0 0
    %965 = vmatpush1.bf16.msra.mxu0 0
    %966 = vmatprep.subr.bf16.mxu0 0
    %967 = vmatpush1.bf16.msra.mxu0 0
    %968 = vmatprep.subr.bf16.mxu0 0
    %969 = vmatpush1.bf16.msra.mxu0 0
    %970 = vmatprep.subr.bf16.mxu0 0
    %971 = vmatpush1.bf16.msra.mxu0 0
    %972 = vmatprep.subr.bf16.mxu0 0
    %973 = vmatpush1.bf16.msra.mxu0 0
    %974 = vmatprep.subr.bf16.mxu0 0
    %975 = vmatpush1.bf16.msra.mxu0 0
    %976 = vmatprep.subr.bf16.mxu0 0
    %977 = vmatpush1.bf16.msra.mxu0 0
    %978 = vmatprep.subr.bf16.mxu0 0
    %979 = vmatpush1.bf16.msra.mxu0 0
    %980 = vmatprep.subr.bf16.mxu0 0
    %981 = vmatpush1.bf16.msra.mxu0 0
    %982 = vmatprep.mubr.bf16.mxu0 0
    %983 = vmatmul.mubr.bf16.gmra.mrb[0].mxu0 %v945
    %v984 = vpop.f32.mrb[0].mxu0
    %v985 = vadd.f32 0.0, %v984
    %v986 = vpop.f32.mrb[0].mxu0
    %v987 = vpop.f32.mrb[0].mxu0
    %v988 = vpop.f32.mrb[0].mxu0
    %989 = vdwg.mxu0
    %990 = vrot.lane.b32.xlu0 %v143, 40
    %v991 = vpop.permute.xlu0 %990
    %v993 = vsel %vm146, %v941, 0
    %v996 = vsel %vm270, %v991, 0
    %998 = vmatprep.subr.bf16.mxu0 0
    %999 = vmatpush1.bf16.msra.mxu0 %v996
    %1000 = vmatprep.subr.bf16.mxu0 0
    %1001 = vmatpush1.bf16.msra.mxu0 0
    %1002 = vmatprep.subr.bf16.mxu0 0
    %1003 = vmatpush1.bf16.msra.mxu0 0
    %1004 = vmatprep.subr.bf16.mxu0 0
    %1005 = vmatpush1.bf16.msra.mxu0 0
    %1006 = vmatprep.subr.bf16.mxu0 0
    %1007 = vmatpush1.bf16.msra.mxu0 0
    %1008 = vmatprep.subr.bf16.mxu0 0
    %1009 = vmatpush1.bf16.msra.mxu0 0
    %1010 = vmatprep.subr.bf16.mxu0 0
    %1011 = vmatpush1.bf16.msra.mxu0 0
    %1012 = vmatprep.subr.bf16.mxu0 0
    %1013 = vmatpush1.bf16.msra.mxu0 0
    %1014 = vmatprep.subr.bf16.mxu0 0
    %1015 = vmatpush1.bf16.msra.mxu0 0
    %1016 = vmatprep.subr.bf16.mxu0 0
    %1017 = vmatpush1.bf16.msra.mxu0 0
    %1018 = vmatprep.subr.bf16.mxu0 0
    %1019 = vmatpush1.bf16.msra.mxu0 0
    %1020 = vmatprep.subr.bf16.mxu0 0
    %1021 = vmatpush1.bf16.msra.mxu0 0
    %1022 = vmatprep.subr.bf16.mxu0 0
    %1023 = vmatpush1.bf16.msra.mxu0 0
    %1024 = vmatprep.subr.bf16.mxu0 0
    %1025 = vmatpush1.bf16.msra.mxu0 0
    %1026 = vmatprep.subr.bf16.mxu0 0
    %1027 = vmatpush1.bf16.msra.mxu0 0
    %1028 = vmatprep.subr.bf16.mxu0 0
    %1029 = vmatpush1.bf16.msra.mxu0 0
    %1030 = vmatprep.mubr.bf16.mxu0 0
    %1031 = vmatmul.mubr.bf16.gmra.mrb[0].mxu0 %v993
    %v1032 = vpop.f32.mrb[0].mxu0
    %v1033 = vadd.f32 0.0, %v1032
    %v1034 = vpop.f32.mrb[0].mxu0
    %v1035 = vpop.f32.mrb[0].mxu0
    %v1036 = vpop.f32.mrb[0].mxu0
    %1037 = vdwg.mxu0
    %v1038 = vpack.c.bf16 %v1033, %v985
    %1040 = vrot.lane.b32.xlu0 %v1038, 24
    %v1041 = vpop.permute.xlu0 %1040
    %vm1043 = vcmask 261312
    %1044 = vst.msk [vmem:[#allocation3] sm:$0xff] %vm1043, %v1041
    %v1045 = vld [vmem:[#allocation3] sm:$0xff]
    %v1046 = vld [vmem:[#allocation9] sm:$0xf]
    %v1047 = vld [vmem:[#allocation9 + $0x4] sm:$0xf]
    %v1048 = vld [vmem:[#allocation9 + $0x8] sm:$0xf]
    %v1049 = vld [vmem:[#allocation9 + $0xc] sm:$0xf]
    %v1054 = vunpack.c.l.b16 %v1046
    %v1055 = vunpack.c.l.b16 %v1047
    %v1056 = vunpack.c.l.b16 %v1048
    %v1057 = vunpack.c.l.b16 %v1049
    %v1058 = vpack.c.b16 %v1055, %v1054
    %v1059 = vpack.c.b16 %v1057, %v1056
    %v1063 = vsel %vm93, %v1045, 0
    %1065 = vmatprep.subr.bf16.mxu0 0
    %1066 = vmatpush1.bf16.msra.mxu0 %v1058
    %1067 = vmatprep.subr.bf16.mxu0 0
    %1068 = vmatpush1.bf16.msra.mxu0 %v1059
    %1069 = vmatprep.subr.bf16.mxu0 0
    %1070 = vmatpush1.bf16.msra.mxu0 0
    %1071 = vmatprep.subr.bf16.mxu0 0
    %1072 = vmatpush1.bf16.msra.mxu0 0
    %1073 = vmatprep.subr.bf16.mxu0 0
    %1074 = vmatpush1.bf16.msra.mxu0 0
    %1075 = vmatprep.subr.bf16.mxu0 0
    %1076 = vmatpush1.bf16.msra.mxu0 0
    %1077 = vmatprep.subr.bf16.mxu0 0
    %1078 = vmatpush1.bf16.msra.mxu0 0
    %1079 = vmatprep.subr.bf16.mxu0 0
    %1080 = vmatpush1.bf16.msra.mxu0 0
    %1081 = vmatprep.subr.bf16.mxu0 0
    %1082 = vmatpush1.bf16.msra.mxu0 0
    %1083 = vmatprep.subr.bf16.mxu0 0
    %1084 = vmatpush1.bf16.msra.mxu0 0
    %1085 = vmatprep.subr.bf16.mxu0 0
    %1086 = vmatpush1.bf16.msra.mxu0 0
    %1087 = vmatprep.subr.bf16.mxu0 0
    %1088 = vmatpush1.bf16.msra.mxu0 0
    %1089 = vmatprep.subr.bf16.mxu0 0
    %1090 = vmatpush1.bf16.msra.mxu0 0
    %1091 = vmatprep.subr.bf16.mxu0 0
    %1092 = vmatpush1.bf16.msra.mxu0 0
    %1093 = vmatprep.subr.bf16.mxu0 0
    %1094 = vmatpush1.bf16.msra.mxu0 0
    %1095 = vmatprep.subr.bf16.mxu0 0
    %1096 = vmatpush1.bf16.msra.mxu0 0
    %1097 = vmatprep.mubr.bf16.mxu0 0
    %1098 = vmatmul.mubr.bf16.gmra.mrb[0].mxu0 %v1063
    %v1099 = vpop.f32.mrb[0].mxu0
    %v1100 = vadd.f32 0.0, %v1099
    %v1101 = vpop.f32.mrb[0].mxu0
    %v1102 = vpop.f32.mrb[0].mxu0
    %v1103 = vadd.f32 0.0, %v1102
    %v1104 = vpop.f32.mrb[0].mxu0
    %1105 = vdwg.mxu0
    %p1106 = scmp.eq.s32.totalorder 0, 0
    // Predicated region
    $region34: #{tpu_custom_call.1} parent=1 // pred_check
      %p1107 = pneg %p1106
    $region35: #{tpu_custom_call.1} parent=1 // pred_check_branch
      %1109 = sbr.rel (%p1107) target = $region37
    $region36: #{tpu_custom_call.1} parent=1 // pred_region
      %1110 = vst.msk [vmem:[#allocation2] sm:$0xff] %vm93, %v1100
      %1111 = vst.msk [vmem:[#allocation2 + $0x8] sm:$0xff] %vm93, %v1103
    $region37: #{tpu_custom_call.1} parent=1 // pred_fallthru
      _
    %p1112 = scmp.gt.s32.totalorder 0, 0
    // Predicated region
    $region38: #{tpu_custom_call.1} parent=1 // pred_check
      %p1113 = pneg %p1112
    $region39: #{tpu_custom_call.1} parent=1 // pred_check_branch
      %1115 = sbr.rel (%p1113) target = $region41
    $region40: #{tpu_custom_call.1} parent=1 // pred_region
      %v1116 = vld [vmem:[#allocation2] sm:$0xff]
      %v1117 = vld [vmem:[#allocation2 + $0x8] sm:$0xff]
      %v1118 = vadd.f32 %v1116, %v1100
      %v1119 = vadd.f32 %v1117, %v1103
      %1120 = vst.msk [vmem:[#allocation2] sm:$0xff] %vm93, %v1118
      %1121 = vst.msk [vmem:[#allocation2 + $0x8] sm:$0xff] %vm93, %v1119
    $region41: #{tpu_custom_call.1} parent=1 // pred_fallthru
      _
    // Predicated region
    $region42: #{tpu_custom_call.1} parent=1 // pred_check
      %p1122 = pneg %p1106
    $region43: #{tpu_custom_call.1} parent=1 // pred_check_branch
      %1124 = sbr.rel (%p1122) target = $region45
    $region44: #{tpu_custom_call.1} parent=1 // pred_region
      %v1125 = vld [vmem:[#allocation2] sm:$0xff]
      %v1126 = vld [vmem:[#allocation2 + $0x8] sm:$0xff]
      %v1127 = vld [vmem:[%s4] sm:$0x1]
      %v1129 = vlaneseq
      %v1130 = vshrl.u32 %v1129, 7
      %v1131 = vsub.s32 0, %v1130
      %v1132 = vrot.slane %v1127, %v1131
      %v1134 = vadd.f32 %v1125, %v1132
      %v1135 = vadd.f32 %v1126, %v1132
      %1136 = vst.msk [vmem:[#allocation10] sm:$0xff] %vm93, %v1134
      %1137 = vst.msk [vmem:[#allocation10 + $0x8] sm:$0xff] %vm93, %v1135
    $region45: #{tpu_custom_call.1} parent=1 // pred_fallthru
      _
    // Predicated region
    $region46: #{tpu_custom_call.1} parent=1 // pred_check
      _
    $region47: #{tpu_custom_call.1} parent=1 // pred_check_branch
      %1139 = sbr.rel (0) target = $region49
    $region48: #{tpu_custom_call.1} parent=1 // pred_region
      %s1141 = ssub.s32 256, 256
      %1142 = vsyncadd [#allocation6], %s1141
      %s1143 = sshll.u32 [#allocation10], 4
      %s1144 = int_to_ptr.vmem [resolvable:$true] %s1143
      %1149 = dma.vmem_to_hbm [thread:$0]  %s1144, 256, %s5, [#allocation6], 128, 128, 8
    $region49: #{tpu_custom_call.1} parent=1 // pred_fallthru
      _
    // Predicated region
    $region50: #{tpu_custom_call.1} parent=1 // pred_check
      _
    $region51: #{tpu_custom_call.1} parent=1 // pred_check_branch
      %1151 = sbr.rel (0) target = $region53
    $region52: #{tpu_custom_call.1} parent=1 // pred_region
      %1152 = dma.done [#allocation6], 256
    $region53: #{tpu_custom_call.1} parent=1 // pred_fallthru
      _
    %1153 = vsyncpa [#allocation5], 1
    %1154 = vsyncpa [#allocation8], 1
    %1155 = vsyncpa [#allocation6], 1

</llo_original>
